<compile_context>
chip_gen: v7x
topology: tpu7x:2x2x1
jax: 0.10.0
libtpu: 0.0.40
codegen_flags: <defaults>
</compile_context>

<pallas_src>
import jax
import jax.numpy as jnp
from jax.experimental import pallas as pl
from jax.experimental.pallas import tpu as pltpu


# (in, out) per layer -- mirrors torch.nn.Linear(6,5), Linear(5,5) x 4.
DIMS = [(6, 5), (5, 5), (5, 5), (5, 5), (5, 5)]
LANES = 128

# Flat scalar layout of the packed parameter vector: all weights first
# (row-major (out, in), i.e. torch layout), then all biases.
W_OFFS, B_OFFS = [], []
_off = 0
for _d_in, _d_out in DIMS:
    W_OFFS.append(_off)
    _off += _d_in * _d_out
for _d_in, _d_out in DIMS:
    B_OFFS.append(_off)
    _off += _d_out
N_SCALARS = _off                                   # 130 weights + 25 biases


def pack_params_flat(params):
    """Flatten [(W (out,in), b (out,)), ...] (torch layout) into (N_SCALARS,) f32."""
    parts = [w.astype(jnp.float32).reshape(-1) for w, _ in params]
    parts += [b.astype(jnp.float32).reshape(-1) for _, b in params]
    return jnp.concatenate(parts)


def dqn_kernel(p_ref, x_ref, o_ref):
    # p_ref: SMEM (N_SCALARS,) f32  -- all weights + biases as scalars.
    # x_ref: VMEM (6, R, 128) f32   -- feature planes; batch on sublanes+lanes.
    # o_ref: VMEM (5, R, 128) f32
    h = [x_ref[i] for i in range(DIMS[0][0])]          # 6 dense (R,128) planes
    n_layers = len(DIMS)
    for li, (d_in, d_out) in enumerate(DIMS):
        w0, b0 = W_OFFS[li], B_OFFS[li]
        new_h = []
        for o in range(d_out):
            # Scalar-operand FMAs on fully dense planes (VPU); bias from SMEM.
            acc = h[0] * p_ref[w0 + o * d_in]
            for i in range(1, d_in):
                acc = acc + h[i] * p_ref[w0 + o * d_in + i]
            acc = acc + p_ref[b0 + o]
            if li < n_layers - 1:
                acc = jnp.tanh(acc)                    # EUP slot, effectively free
            new_h.append(acc)
        h = new_h
    for o in range(DIMS[-1][1]):
        o_ref[o] = h[o]


def _choose_rows_per_block(nrows, target):
    """Rows per block: multiple of 8, <= target, and >=2 grid blocks whenever
    possible (so v7x can shard the 'parallel' axis across its 2 TensorCores)."""
    if nrows < 16:
        return nrows                                   # single full-extent block
    half = -(-nrows // 2)
    return min(target, ((half + 7) // 8) * 8)


def _dqn_forward_pallas(x, params, *, rows_per_block=None):
    """x: (B, 6) float; returns (B, 5) float32."""
    B = x.shape[0]
    d_in0, d_out_last = DIMS[0][0], DIMS[-1][1]

    nrows = -(-B // LANES)
    Bp = nrows * LANES                 # pad only to the next multiple of 128

    if rows_per_block is None:
        # 256 rows = 32768 samples/step: safe for every generation's scoped
        # VMEM (v5e 16 MiB). On v6e/v7x (32 MiB scoped) 512-1024 also works;
        # pass rows_per_block explicitly to use it.
        rows_per_block = _choose_rows_per_block(nrows, target=256)
    num_blocks = pl.cdiv(nrows, rows_per_block)

    flat = pack_params_flat(params)

    # (B,6) -> (6,B) -> pad to (6,Bp) -> (6, nrows, 128). The pad fuses into
    # the transpose copy (one HBM pass).
    xr = jnp.pad(x.astype(jnp.float32).T, ((0, 0), (0, Bp - B))).reshape(
        d_in0, nrows, LANES)

    out = pl.pallas_call(
        dqn_kernel,
        out_shape=jax.ShapeDtypeStruct((d_out_last, nrows, LANES), jnp.float32),
        grid=(num_blocks,),
        in_specs=[
            # 155 scalars, resident in SMEM across all grid steps.
            pl.BlockSpec(memory_space=pltpu.MemorySpace.SMEM),
            pl.BlockSpec((d_in0, rows_per_block, LANES), lambda i: (0, i, 0)),
        ],
        out_specs=pl.BlockSpec((d_out_last, rows_per_block, LANES),
                               lambda i: (0, i, 0)),
        compiler_params=pltpu.CompilerParams(
            dimension_semantics=("parallel",)),
    )(flat, xr)

    # (5, nrows, 128) -> (5, Bp) -> [:, :B] -> (B, 5): the slice fuses into the
    # output transpose (one HBM pass).
    return out.reshape(d_out_last, Bp)[:, :B].T


def reference_forward(x, params):
    """Plain-jnp forward with torch nn.Linear semantics: y = x @ W.T + b."""
    h = x.astype(jnp.float32)
    for i, (w, b) in enumerate(params):
        h = h @ w.T + b
        if i < len(params) - 1:
            h = jnp.tanh(h)
    return h


def dqn_forward(x, params, *, rows_per_block=None, min_pallas_batch=4096):
    """x: (B, 6); params: [(W (out,in), b (out,))] * 5 (torch layout)."""
    B = x.shape[0]
    if B < min_pallas_batch:
        # Small batch: launch + layout copies are pure overhead; let XLA fuse.
        return reference_forward(x, params)
    return _dqn_forward_pallas(x, params, rows_per_block=rows_per_block)


def init_params(key):
    """Deterministic init mirroring torch.nn.Linear: W (out,in), b (out,),
       both U(-1/sqrt(in), 1/sqrt(in))."""
    params = []
    for d_in, d_out in DIMS:
        kw, kb, key = jax.random.split(key, 3)
        bound = 1.0 / (d_in ** 0.5)
        w = jax.random.uniform(kw, (d_out, d_in), jnp.float32, -bound, bound)
        b = jax.random.uniform(kb, (d_out,), jnp.float32, -bound, bound)
        params.append((w, b))
    return params


if __name__ == "__main__":
    key = jax.random.PRNGKey(0)
    kx, kp = jax.random.split(key)
    params = init_params(kp)

    # Large enough to take the Pallas path with >= 2 row blocks.
    B = 8192
    x = jax.random.normal(kx, (B, 6), jnp.float32)
    y = dqn_forward(x, params)
    jax.block_until_ready(y)
    y_ref = reference_forward(x, params)
    assert y.shape == (B, 5)
    assert jnp.allclose(y, y_ref, atol=1e-5, rtol=1e-5)

    # Batch that is not a multiple of 128: exercises the ragged (masked) last block.
    B2 = 8000
    x2 = jax.random.normal(kx, (B2, 6), jnp.float32)
    y2 = _dqn_forward_pallas(x2, params)
    jax.block_until_ready(y2)
    assert jnp.allclose(y2, reference_forward(x2, params), atol=1e-5, rtol=1e-5)

    # Tiny batch: falls back to plain jnp by design.
    y_small = dqn_forward(x[:2], params)
    jax.block_until_ready(y_small)
    assert jnp.allclose(y_small, y_ref[:2], atol=1e-5, rtol=1e-5)

    print("KERNEL_OK")
</pallas_src>

<mosaic_0001>
module attributes {stable_mosaic.version = 11 : i64} {
  func.func @dqn_kernel(%arg0: i32, %arg1: memref<155xf32, #tpu.memory_space<smem>>, %arg2: memref<6x32x128xf32, #tpu.memory_space<vmem>>, %arg3: memref<5x32x128xf32, #tpu.memory_space<vmem>>) attributes {dimension_semantics = [#tpu.dimension_semantics<parallel>], iteration_bounds = array<i64: 2>, scalar_prefetch = 0 : i64, scratch_operands = 0 : i64, tpu.core_type = #tpu.core_type<tc>, window_params = [{transform_indices = @transform_0, window_bounds = array<i64: 155>}, {transform_indices = @transform_1, window_bounds = array<i64: 6, 32, 128>}, {transform_indices = @transform_2, window_bounds = array<i64: 5, 32, 128>}]} {
    %c0 = arith.constant 0 : index
    %c0_0 = arith.constant 0 : index
    %c0_1 = arith.constant 0 : index
    %0 = vector.load %arg2[%c0, %c0_0, %c0_1] : memref<6x32x128xf32, #tpu.memory_space<vmem>>, vector<1x32x128xf32>
    %1 = vector.shape_cast %0 : vector<1x32x128xf32> to vector<32x128xf32>
    %c1 = arith.constant 1 : index
    %c0_2 = arith.constant 0 : index
    %c0_3 = arith.constant 0 : index
    %2 = vector.load %arg2[%c1, %c0_2, %c0_3] : memref<6x32x128xf32, #tpu.memory_space<vmem>>, vector<1x32x128xf32>
    %3 = vector.shape_cast %2 : vector<1x32x128xf32> to vector<32x128xf32>
    %c2 = arith.constant 2 : index
    %c0_4 = arith.constant 0 : index
    %c0_5 = arith.constant 0 : index
    %4 = vector.load %arg2[%c2, %c0_4, %c0_5] : memref<6x32x128xf32, #tpu.memory_space<vmem>>, vector<1x32x128xf32>
    %5 = vector.shape_cast %4 : vector<1x32x128xf32> to vector<32x128xf32>
    %c3 = arith.constant 3 : index
    %c0_6 = arith.constant 0 : index
    %c0_7 = arith.constant 0 : index
    %6 = vector.load %arg2[%c3, %c0_6, %c0_7] : memref<6x32x128xf32, #tpu.memory_space<vmem>>, vector<1x32x128xf32>
    %7 = vector.shape_cast %6 : vector<1x32x128xf32> to vector<32x128xf32>
    %c4 = arith.constant 4 : index
    %c0_8 = arith.constant 0 : index
    %c0_9 = arith.constant 0 : index
    %8 = vector.load %arg2[%c4, %c0_8, %c0_9] : memref<6x32x128xf32, #tpu.memory_space<vmem>>, vector<1x32x128xf32>
    %9 = vector.shape_cast %8 : vector<1x32x128xf32> to vector<32x128xf32>
    %c5 = arith.constant 5 : index
    %c0_10 = arith.constant 0 : index
    %c0_11 = arith.constant 0 : index
    %10 = vector.load %arg2[%c5, %c0_10, %c0_11] : memref<6x32x128xf32, #tpu.memory_space<vmem>>, vector<1x32x128xf32>
    %11 = vector.shape_cast %10 : vector<1x32x128xf32> to vector<32x128xf32>
    %c0_12 = arith.constant 0 : index
    %12 = memref.load %arg1[%c0_12] : memref<155xf32, #tpu.memory_space<smem>>
    %13 = vector.broadcast %12 : f32 to vector<32x128xf32>
    %14 = arith.mulf %1, %13 : vector<32x128xf32>
    %c1_13 = arith.constant 1 : index
    %15 = memref.load %arg1[%c1_13] : memref<155xf32, #tpu.memory_space<smem>>
    %16 = vector.broadcast %15 : f32 to vector<32x128xf32>
    %17 = arith.mulf %3, %16 : vector<32x128xf32>
    %18 = arith.addf %14, %17 : vector<32x128xf32>
    %c2_14 = arith.constant 2 : index
    %19 = memref.load %arg1[%c2_14] : memref<155xf32, #tpu.memory_space<smem>>
    %20 = vector.broadcast %19 : f32 to vector<32x128xf32>
    %21 = arith.mulf %5, %20 : vector<32x128xf32>
    %22 = arith.addf %18, %21 : vector<32x128xf32>
    %c3_15 = arith.constant 3 : index
    %23 = memref.load %arg1[%c3_15] : memref<155xf32, #tpu.memory_space<smem>>
    %24 = vector.broadcast %23 : f32 to vector<32x128xf32>
    %25 = arith.mulf %7, %24 : vector<32x128xf32>
    %26 = arith.addf %22, %25 : vector<32x128xf32>
    %c4_16 = arith.constant 4 : index
    %27 = memref.load %arg1[%c4_16] : memref<155xf32, #tpu.memory_space<smem>>
    %28 = vector.broadcast %27 : f32 to vector<32x128xf32>
    %29 = arith.mulf %9, %28 : vector<32x128xf32>
    %30 = arith.addf %26, %29 : vector<32x128xf32>
    %c5_17 = arith.constant 5 : index
    %31 = memref.load %arg1[%c5_17] : memref<155xf32, #tpu.memory_space<smem>>
    %32 = vector.broadcast %31 : f32 to vector<32x128xf32>
    %33 = arith.mulf %11, %32 : vector<32x128xf32>
    %34 = arith.addf %30, %33 : vector<32x128xf32>
    %c130 = arith.constant 130 : index
    %35 = memref.load %arg1[%c130] : memref<155xf32, #tpu.memory_space<smem>>
    %36 = vector.broadcast %35 : f32 to vector<32x128xf32>
    %37 = arith.addf %34, %36 : vector<32x128xf32>
    %38 = math.tanh %37 : vector<32x128xf32>
    %c6 = arith.constant 6 : index
    %39 = memref.load %arg1[%c6] : memref<155xf32, #tpu.memory_space<smem>>
    %40 = vector.broadcast %39 : f32 to vector<32x128xf32>
    %41 = arith.mulf %1, %40 : vector<32x128xf32>
    %c7 = arith.constant 7 : index
    %42 = memref.load %arg1[%c7] : memref<155xf32, #tpu.memory_space<smem>>
    %43 = vector.broadcast %42 : f32 to vector<32x128xf32>
    %44 = arith.mulf %3, %43 : vector<32x128xf32>
    %45 = arith.addf %41, %44 : vector<32x128xf32>
    %c8 = arith.constant 8 : index
    %46 = memref.load %arg1[%c8] : memref<155xf32, #tpu.memory_space<smem>>
    %47 = vector.broadcast %46 : f32 to vector<32x128xf32>
    %48 = arith.mulf %5, %47 : vector<32x128xf32>
    %49 = arith.addf %45, %48 : vector<32x128xf32>
    %c9 = arith.constant 9 : index
    %50 = memref.load %arg1[%c9] : memref<155xf32, #tpu.memory_space<smem>>
    %51 = vector.broadcast %50 : f32 to vector<32x128xf32>
    %52 = arith.mulf %7, %51 : vector<32x128xf32>
    %53 = arith.addf %49, %52 : vector<32x128xf32>
    %c10 = arith.constant 10 : index
    %54 = memref.load %arg1[%c10] : memref<155xf32, #tpu.memory_space<smem>>
    %55 = vector.broadcast %54 : f32 to vector<32x128xf32>
    %56 = arith.mulf %9, %55 : vector<32x128xf32>
    %57 = arith.addf %53, %56 : vector<32x128xf32>
    %c11 = arith.constant 11 : index
    %58 = memref.load %arg1[%c11] : memref<155xf32, #tpu.memory_space<smem>>
    %59 = vector.broadcast %58 : f32 to vector<32x128xf32>
    %60 = arith.mulf %11, %59 : vector<32x128xf32>
    %61 = arith.addf %57, %60 : vector<32x128xf32>
    %c131 = arith.constant 131 : index
    %62 = memref.load %arg1[%c131] : memref<155xf32, #tpu.memory_space<smem>>
    %63 = vector.broadcast %62 : f32 to vector<32x128xf32>
    %64 = arith.addf %61, %63 : vector<32x128xf32>
    %65 = math.tanh %64 : vector<32x128xf32>
    %c12 = arith.constant 12 : index
    %66 = memref.load %arg1[%c12] : memref<155xf32, #tpu.memory_space<smem>>
    %67 = vector.broadcast %66 : f32 to vector<32x128xf32>
    %68 = arith.mulf %1, %67 : vector<32x128xf32>
    %c13 = arith.constant 13 : index
    %69 = memref.load %arg1[%c13] : memref<155xf32, #tpu.memory_space<smem>>
    %70 = vector.broadcast %69 : f32 to vector<32x128xf32>
    %71 = arith.mulf %3, %70 : vector<32x128xf32>
    %72 = arith.addf %68, %71 : vector<32x128xf32>
    %c14 = arith.constant 14 : index
    %73 = memref.load %arg1[%c14] : memref<155xf32, #tpu.memory_space<smem>>
    %74 = vector.broadcast %73 : f32 to vector<32x128xf32>
    %75 = arith.mulf %5, %74 : vector<32x128xf32>
    %76 = arith.addf %72, %75 : vector<32x128xf32>
    %c15 = arith.constant 15 : index
    %77 = memref.load %arg1[%c15] : memref<155xf32, #tpu.memory_space<smem>>
    %78 = vector.broadcast %77 : f32 to vector<32x128xf32>
    %79 = arith.mulf %7, %78 : vector<32x128xf32>
    %80 = arith.addf %76, %79 : vector<32x128xf32>
    %c16 = arith.constant 16 : index
    %81 = memref.load %arg1[%c16] : memref<155xf32, #tpu.memory_space<smem>>
    %82 = vector.broadcast %81 : f32 to vector<32x128xf32>
    %83 = arith.mulf %9, %82 : vector<32x128xf32>
    %84 = arith.addf %80, %83 : vector<32x128xf32>
    %c17 = arith.constant 17 : index
    %85 = memref.load %arg1[%c17] : memref<155xf32, #tpu.memory_space<smem>>
    %86 = vector.broadcast %85 : f32 to vector<32x128xf32>
    %87 = arith.mulf %11, %86 : vector<32x128xf32>
    %88 = arith.addf %84, %87 : vector<32x128xf32>
    %c132 = arith.constant 132 : index
    %89 = memref.load %arg1[%c132] : memref<155xf32, #tpu.memory_space<smem>>
    %90 = vector.broadcast %89 : f32 to vector<32x128xf32>
    %91 = arith.addf %88, %90 : vector<32x128xf32>
    %92 = math.tanh %91 : vector<32x128xf32>
    %c18 = arith.constant 18 : index
    %93 = memref.load %arg1[%c18] : memref<155xf32, #tpu.memory_space<smem>>
    %94 = vector.broadcast %93 : f32 to vector<32x128xf32>
    %95 = arith.mulf %1, %94 : vector<32x128xf32>
    %c19 = arith.constant 19 : index
    %96 = memref.load %arg1[%c19] : memref<155xf32, #tpu.memory_space<smem>>
    %97 = vector.broadcast %96 : f32 to vector<32x128xf32>
    %98 = arith.mulf %3, %97 : vector<32x128xf32>
    %99 = arith.addf %95, %98 : vector<32x128xf32>
    %c20 = arith.constant 20 : index
    %100 = memref.load %arg1[%c20] : memref<155xf32, #tpu.memory_space<smem>>
    %101 = vector.broadcast %100 : f32 to vector<32x128xf32>
    %102 = arith.mulf %5, %101 : vector<32x128xf32>
    %103 = arith.addf %99, %102 : vector<32x128xf32>
    %c21 = arith.constant 21 : index
    %104 = memref.load %arg1[%c21] : memref<155xf32, #tpu.memory_space<smem>>
    %105 = vector.broadcast %104 : f32 to vector<32x128xf32>
    %106 = arith.mulf %7, %105 : vector<32x128xf32>
    %107 = arith.addf %103, %106 : vector<32x128xf32>
    %c22 = arith.constant 22 : index
    %108 = memref.load %arg1[%c22] : memref<155xf32, #tpu.memory_space<smem>>
    %109 = vector.broadcast %108 : f32 to vector<32x128xf32>
    %110 = arith.mulf %9, %109 : vector<32x128xf32>
    %111 = arith.addf %107, %110 : vector<32x128xf32>
    %c23 = arith.constant 23 : index
    %112 = memref.load %arg1[%c23] : memref<155xf32, #tpu.memory_space<smem>>
    %113 = vector.broadcast %112 : f32 to vector<32x128xf32>
    %114 = arith.mulf %11, %113 : vector<32x128xf32>
    %115 = arith.addf %111, %114 : vector<32x128xf32>
    %c133 = arith.constant 133 : index
    %116 = memref.load %arg1[%c133] : memref<155xf32, #tpu.memory_space<smem>>
    %117 = vector.broadcast %116 : f32 to vector<32x128xf32>
    %118 = arith.addf %115, %117 : vector<32x128xf32>
    %119 = math.tanh %118 : vector<32x128xf32>
    %c24 = arith.constant 24 : index
    %120 = memref.load %arg1[%c24] : memref<155xf32, #tpu.memory_space<smem>>
    %121 = vector.broadcast %120 : f32 to vector<32x128xf32>
    %122 = arith.mulf %1, %121 : vector<32x128xf32>
    %c25 = arith.constant 25 : index
    %123 = memref.load %arg1[%c25] : memref<155xf32, #tpu.memory_space<smem>>
    %124 = vector.broadcast %123 : f32 to vector<32x128xf32>
    %125 = arith.mulf %3, %124 : vector<32x128xf32>
    %126 = arith.addf %122, %125 : vector<32x128xf32>
    %c26 = arith.constant 26 : index
    %127 = memref.load %arg1[%c26] : memref<155xf32, #tpu.memory_space<smem>>
    %128 = vector.broadcast %127 : f32 to vector<32x128xf32>
    %129 = arith.mulf %5, %128 : vector<32x128xf32>
    %130 = arith.addf %126, %129 : vector<32x128xf32>
    %c27 = arith.constant 27 : index
    %131 = memref.load %arg1[%c27] : memref<155xf32, #tpu.memory_space<smem>>
    %132 = vector.broadcast %131 : f32 to vector<32x128xf32>
    %133 = arith.mulf %7, %132 : vector<32x128xf32>
    %134 = arith.addf %130, %133 : vector<32x128xf32>
    %c28 = arith.constant 28 : index
    %135 = memref.load %arg1[%c28] : memref<155xf32, #tpu.memory_space<smem>>
    %136 = vector.broadcast %135 : f32 to vector<32x128xf32>
    %137 = arith.mulf %9, %136 : vector<32x128xf32>
    %138 = arith.addf %134, %137 : vector<32x128xf32>
    %c29 = arith.constant 29 : index
    %139 = memref.load %arg1[%c29] : memref<155xf32, #tpu.memory_space<smem>>
    %140 = vector.broadcast %139 : f32 to vector<32x128xf32>
    %141 = arith.mulf %11, %140 : vector<32x128xf32>
    %142 = arith.addf %138, %141 : vector<32x128xf32>
    %c134 = arith.constant 134 : index
    %143 = memref.load %arg1[%c134] : memref<155xf32, #tpu.memory_space<smem>>
    %144 = vector.broadcast %143 : f32 to vector<32x128xf32>
    %145 = arith.addf %142, %144 : vector<32x128xf32>
    %146 = math.tanh %145 : vector<32x128xf32>
    %c30 = arith.constant 30 : index
    %147 = memref.load %arg1[%c30] : memref<155xf32, #tpu.memory_space<smem>>
    %148 = vector.broadcast %147 : f32 to vector<32x128xf32>
    %149 = arith.mulf %38, %148 : vector<32x128xf32>
    %c31 = arith.constant 31 : index
    %150 = memref.load %arg1[%c31] : memref<155xf32, #tpu.memory_space<smem>>
    %151 = vector.broadcast %150 : f32 to vector<32x128xf32>
    %152 = arith.mulf %65, %151 : vector<32x128xf32>
    %153 = arith.addf %149, %152 : vector<32x128xf32>
    %c32 = arith.constant 32 : index
    %154 = memref.load %arg1[%c32] : memref<155xf32, #tpu.memory_space<smem>>
    %155 = vector.broadcast %154 : f32 to vector<32x128xf32>
    %156 = arith.mulf %92, %155 : vector<32x128xf32>
    %157 = arith.addf %153, %156 : vector<32x128xf32>
    %c33 = arith.constant 33 : index
    %158 = memref.load %arg1[%c33] : memref<155xf32, #tpu.memory_space<smem>>
    %159 = vector.broadcast %158 : f32 to vector<32x128xf32>
    %160 = arith.mulf %119, %159 : vector<32x128xf32>
    %161 = arith.addf %157, %160 : vector<32x128xf32>
    %c34 = arith.constant 34 : index
    %162 = memref.load %arg1[%c34] : memref<155xf32, #tpu.memory_space<smem>>
    %163 = vector.broadcast %162 : f32 to vector<32x128xf32>
    %164 = arith.mulf %146, %163 : vector<32x128xf32>
    %165 = arith.addf %161, %164 : vector<32x128xf32>
    %c135 = arith.constant 135 : index
    %166 = memref.load %arg1[%c135] : memref<155xf32, #tpu.memory_space<smem>>
    %167 = vector.broadcast %166 : f32 to vector<32x128xf32>
    %168 = arith.addf %165, %167 : vector<32x128xf32>
    %169 = math.tanh %168 : vector<32x128xf32>
    %c35 = arith.constant 35 : index
    %170 = memref.load %arg1[%c35] : memref<155xf32, #tpu.memory_space<smem>>
    %171 = vector.broadcast %170 : f32 to vector<32x128xf32>
    %172 = arith.mulf %38, %171 : vector<32x128xf32>
    %c36 = arith.constant 36 : index
    %173 = memref.load %arg1[%c36] : memref<155xf32, #tpu.memory_space<smem>>
    %174 = vector.broadcast %173 : f32 to vector<32x128xf32>
    %175 = arith.mulf %65, %174 : vector<32x128xf32>
    %176 = arith.addf %172, %175 : vector<32x128xf32>
    %c37 = arith.constant 37 : index
    %177 = memref.load %arg1[%c37] : memref<155xf32, #tpu.memory_space<smem>>
    %178 = vector.broadcast %177 : f32 to vector<32x128xf32>
    %179 = arith.mulf %92, %178 : vector<32x128xf32>
    %180 = arith.addf %176, %179 : vector<32x128xf32>
    %c38 = arith.constant 38 : index
    %181 = memref.load %arg1[%c38] : memref<155xf32, #tpu.memory_space<smem>>
    %182 = vector.broadcast %181 : f32 to vector<32x128xf32>
    %183 = arith.mulf %119, %182 : vector<32x128xf32>
    %184 = arith.addf %180, %183 : vector<32x128xf32>
    %c39 = arith.constant 39 : index
    %185 = memref.load %arg1[%c39] : memref<155xf32, #tpu.memory_space<smem>>
    %186 = vector.broadcast %185 : f32 to vector<32x128xf32>
    %187 = arith.mulf %146, %186 : vector<32x128xf32>
    %188 = arith.addf %184, %187 : vector<32x128xf32>
    %c136 = arith.constant 136 : index
    %189 = memref.load %arg1[%c136] : memref<155xf32, #tpu.memory_space<smem>>
    %190 = vector.broadcast %189 : f32 to vector<32x128xf32>
    %191 = arith.addf %188, %190 : vector<32x128xf32>
    %192 = math.tanh %191 : vector<32x128xf32>
    %c40 = arith.constant 40 : index
    %193 = memref.load %arg1[%c40] : memref<155xf32, #tpu.memory_space<smem>>
    %194 = vector.broadcast %193 : f32 to vector<32x128xf32>
    %195 = arith.mulf %38, %194 : vector<32x128xf32>
    %c41 = arith.constant 41 : index
    %196 = memref.load %arg1[%c41] : memref<155xf32, #tpu.memory_space<smem>>
    %197 = vector.broadcast %196 : f32 to vector<32x128xf32>
    %198 = arith.mulf %65, %197 : vector<32x128xf32>
    %199 = arith.addf %195, %198 : vector<32x128xf32>
    %c42 = arith.constant 42 : index
    %200 = memref.load %arg1[%c42] : memref<155xf32, #tpu.memory_space<smem>>
    %201 = vector.broadcast %200 : f32 to vector<32x128xf32>
    %202 = arith.mulf %92, %201 : vector<32x128xf32>
    %203 = arith.addf %199, %202 : vector<32x128xf32>
    %c43 = arith.constant 43 : index
    %204 = memref.load %arg1[%c43] : memref<155xf32, #tpu.memory_space<smem>>
    %205 = vector.broadcast %204 : f32 to vector<32x128xf32>
    %206 = arith.mulf %119, %205 : vector<32x128xf32>
    %207 = arith.addf %203, %206 : vector<32x128xf32>
    %c44 = arith.constant 44 : index
    %208 = memref.load %arg1[%c44] : memref<155xf32, #tpu.memory_space<smem>>
    %209 = vector.broadcast %208 : f32 to vector<32x128xf32>
    %210 = arith.mulf %146, %209 : vector<32x128xf32>
    %211 = arith.addf %207, %210 : vector<32x128xf32>
    %c137 = arith.constant 137 : index
    %212 = memref.load %arg1[%c137] : memref<155xf32, #tpu.memory_space<smem>>
    %213 = vector.broadcast %212 : f32 to vector<32x128xf32>
    %214 = arith.addf %211, %213 : vector<32x128xf32>
    %215 = math.tanh %214 : vector<32x128xf32>
    %c45 = arith.constant 45 : index
    %216 = memref.load %arg1[%c45] : memref<155xf32, #tpu.memory_space<smem>>
    %217 = vector.broadcast %216 : f32 to vector<32x128xf32>
    %218 = arith.mulf %38, %217 : vector<32x128xf32>
    %c46 = arith.constant 46 : index
    %219 = memref.load %arg1[%c46] : memref<155xf32, #tpu.memory_space<smem>>
    %220 = vector.broadcast %219 : f32 to vector<32x128xf32>
    %221 = arith.mulf %65, %220 : vector<32x128xf32>
    %222 = arith.addf %218, %221 : vector<32x128xf32>
    %c47 = arith.constant 47 : index
    %223 = memref.load %arg1[%c47] : memref<155xf32, #tpu.memory_space<smem>>
    %224 = vector.broadcast %223 : f32 to vector<32x128xf32>
    %225 = arith.mulf %92, %224 : vector<32x128xf32>
    %226 = arith.addf %222, %225 : vector<32x128xf32>
    %c48 = arith.constant 48 : index
    %227 = memref.load %arg1[%c48] : memref<155xf32, #tpu.memory_space<smem>>
    %228 = vector.broadcast %227 : f32 to vector<32x128xf32>
    %229 = arith.mulf %119, %228 : vector<32x128xf32>
    %230 = arith.addf %226, %229 : vector<32x128xf32>
    %c49 = arith.constant 49 : index
    %231 = memref.load %arg1[%c49] : memref<155xf32, #tpu.memory_space<smem>>
    %232 = vector.broadcast %231 : f32 to vector<32x128xf32>
    %233 = arith.mulf %146, %232 : vector<32x128xf32>
    %234 = arith.addf %230, %233 : vector<32x128xf32>
    %c138 = arith.constant 138 : index
    %235 = memref.load %arg1[%c138] : memref<155xf32, #tpu.memory_space<smem>>
    %236 = vector.broadcast %235 : f32 to vector<32x128xf32>
    %237 = arith.addf %234, %236 : vector<32x128xf32>
    %238 = math.tanh %237 : vector<32x128xf32>
    %c50 = arith.constant 50 : index
    %239 = memref.load %arg1[%c50] : memref<155xf32, #tpu.memory_space<smem>>
    %240 = vector.broadcast %239 : f32 to vector<32x128xf32>
    %241 = arith.mulf %38, %240 : vector<32x128xf32>
    %c51 = arith.constant 51 : index
    %242 = memref.load %arg1[%c51] : memref<155xf32, #tpu.memory_space<smem>>
    %243 = vector.broadcast %242 : f32 to vector<32x128xf32>
    %244 = arith.mulf %65, %243 : vector<32x128xf32>
    %245 = arith.addf %241, %244 : vector<32x128xf32>
    %c52 = arith.constant 52 : index
    %246 = memref.load %arg1[%c52] : memref<155xf32, #tpu.memory_space<smem>>
    %247 = vector.broadcast %246 : f32 to vector<32x128xf32>
    %248 = arith.mulf %92, %247 : vector<32x128xf32>
    %249 = arith.addf %245, %248 : vector<32x128xf32>
    %c53 = arith.constant 53 : index
    %250 = memref.load %arg1[%c53] : memref<155xf32, #tpu.memory_space<smem>>
    %251 = vector.broadcast %250 : f32 to vector<32x128xf32>
    %252 = arith.mulf %119, %251 : vector<32x128xf32>
    %253 = arith.addf %249, %252 : vector<32x128xf32>
    %c54 = arith.constant 54 : index
    %254 = memref.load %arg1[%c54] : memref<155xf32, #tpu.memory_space<smem>>
    %255 = vector.broadcast %254 : f32 to vector<32x128xf32>
    %256 = arith.mulf %146, %255 : vector<32x128xf32>
    %257 = arith.addf %253, %256 : vector<32x128xf32>
    %c139 = arith.constant 139 : index
    %258 = memref.load %arg1[%c139] : memref<155xf32, #tpu.memory_space<smem>>
    %259 = vector.broadcast %258 : f32 to vector<32x128xf32>
    %260 = arith.addf %257, %259 : vector<32x128xf32>
    %261 = math.tanh %260 : vector<32x128xf32>
    %c55 = arith.constant 55 : index
    %262 = memref.load %arg1[%c55] : memref<155xf32, #tpu.memory_space<smem>>
    %263 = vector.broadcast %262 : f32 to vector<32x128xf32>
    %264 = arith.mulf %169, %263 : vector<32x128xf32>
    %c56 = arith.constant 56 : index
    %265 = memref.load %arg1[%c56] : memref<155xf32, #tpu.memory_space<smem>>
    %266 = vector.broadcast %265 : f32 to vector<32x128xf32>
    %267 = arith.mulf %192, %266 : vector<32x128xf32>
    %268 = arith.addf %264, %267 : vector<32x128xf32>
    %c57 = arith.constant 57 : index
    %269 = memref.load %arg1[%c57] : memref<155xf32, #tpu.memory_space<smem>>
    %270 = vector.broadcast %269 : f32 to vector<32x128xf32>
    %271 = arith.mulf %215, %270 : vector<32x128xf32>
    %272 = arith.addf %268, %271 : vector<32x128xf32>
    %c58 = arith.constant 58 : index
    %273 = memref.load %arg1[%c58] : memref<155xf32, #tpu.memory_space<smem>>
    %274 = vector.broadcast %273 : f32 to vector<32x128xf32>
    %275 = arith.mulf %238, %274 : vector<32x128xf32>
    %276 = arith.addf %272, %275 : vector<32x128xf32>
    %c59 = arith.constant 59 : index
    %277 = memref.load %arg1[%c59] : memref<155xf32, #tpu.memory_space<smem>>
    %278 = vector.broadcast %277 : f32 to vector<32x128xf32>
    %279 = arith.mulf %261, %278 : vector<32x128xf32>
    %280 = arith.addf %276, %279 : vector<32x128xf32>
    %c140 = arith.constant 140 : index
    %281 = memref.load %arg1[%c140] : memref<155xf32, #tpu.memory_space<smem>>
    %282 = vector.broadcast %281 : f32 to vector<32x128xf32>
    %283 = arith.addf %280, %282 : vector<32x128xf32>
    %284 = math.tanh %283 : vector<32x128xf32>
    %c60 = arith.constant 60 : index
    %285 = memref.load %arg1[%c60] : memref<155xf32, #tpu.memory_space<smem>>
    %286 = vector.broadcast %285 : f32 to vector<32x128xf32>
    %287 = arith.mulf %169, %286 : vector<32x128xf32>
    %c61 = arith.constant 61 : index
    %288 = memref.load %arg1[%c61] : memref<155xf32, #tpu.memory_space<smem>>
    %289 = vector.broadcast %288 : f32 to vector<32x128xf32>
    %290 = arith.mulf %192, %289 : vector<32x128xf32>
    %291 = arith.addf %287, %290 : vector<32x128xf32>
    %c62 = arith.constant 62 : index
    %292 = memref.load %arg1[%c62] : memref<155xf32, #tpu.memory_space<smem>>
    %293 = vector.broadcast %292 : f32 to vector<32x128xf32>
    %294 = arith.mulf %215, %293 : vector<32x128xf32>
    %295 = arith.addf %291, %294 : vector<32x128xf32>
    %c63 = arith.constant 63 : index
    %296 = memref.load %arg1[%c63] : memref<155xf32, #tpu.memory_space<smem>>
    %297 = vector.broadcast %296 : f32 to vector<32x128xf32>
    %298 = arith.mulf %238, %297 : vector<32x128xf32>
    %299 = arith.addf %295, %298 : vector<32x128xf32>
    %c64 = arith.constant 64 : index
    %300 = memref.load %arg1[%c64] : memref<155xf32, #tpu.memory_space<smem>>
    %301 = vector.broadcast %300 : f32 to vector<32x128xf32>
    %302 = arith.mulf %261, %301 : vector<32x128xf32>
    %303 = arith.addf %299, %302 : vector<32x128xf32>
    %c141 = arith.constant 141 : index
    %304 = memref.load %arg1[%c141] : memref<155xf32, #tpu.memory_space<smem>>
    %305 = vector.broadcast %304 : f32 to vector<32x128xf32>
    %306 = arith.addf %303, %305 : vector<32x128xf32>
    %307 = math.tanh %306 : vector<32x128xf32>
    %c65 = arith.constant 65 : index
    %308 = memref.load %arg1[%c65] : memref<155xf32, #tpu.memory_space<smem>>
    %309 = vector.broadcast %308 : f32 to vector<32x128xf32>
    %310 = arith.mulf %169, %309 : vector<32x128xf32>
    %c66 = arith.constant 66 : index
    %311 = memref.load %arg1[%c66] : memref<155xf32, #tpu.memory_space<smem>>
    %312 = vector.broadcast %311 : f32 to vector<32x128xf32>
    %313 = arith.mulf %192, %312 : vector<32x128xf32>
    %314 = arith.addf %310, %313 : vector<32x128xf32>
    %c67 = arith.constant 67 : index
    %315 = memref.load %arg1[%c67] : memref<155xf32, #tpu.memory_space<smem>>
    %316 = vector.broadcast %315 : f32 to vector<32x128xf32>
    %317 = arith.mulf %215, %316 : vector<32x128xf32>
    %318 = arith.addf %314, %317 : vector<32x128xf32>
    %c68 = arith.constant 68 : index
    %319 = memref.load %arg1[%c68] : memref<155xf32, #tpu.memory_space<smem>>
    %320 = vector.broadcast %319 : f32 to vector<32x128xf32>
    %321 = arith.mulf %238, %320 : vector<32x128xf32>
    %322 = arith.addf %318, %321 : vector<32x128xf32>
    %c69 = arith.constant 69 : index
    %323 = memref.load %arg1[%c69] : memref<155xf32, #tpu.memory_space<smem>>
    %324 = vector.broadcast %323 : f32 to vector<32x128xf32>
    %325 = arith.mulf %261, %324 : vector<32x128xf32>
    %326 = arith.addf %322, %325 : vector<32x128xf32>
    %c142 = arith.constant 142 : index
    %327 = memref.load %arg1[%c142] : memref<155xf32, #tpu.memory_space<smem>>
    %328 = vector.broadcast %327 : f32 to vector<32x128xf32>
    %329 = arith.addf %326, %328 : vector<32x128xf32>
    %330 = math.tanh %329 : vector<32x128xf32>
    %c70 = arith.constant 70 : index
    %331 = memref.load %arg1[%c70] : memref<155xf32, #tpu.memory_space<smem>>
    %332 = vector.broadcast %331 : f32 to vector<32x128xf32>
    %333 = arith.mulf %169, %332 : vector<32x128xf32>
    %c71 = arith.constant 71 : index
    %334 = memref.load %arg1[%c71] : memref<155xf32, #tpu.memory_space<smem>>
    %335 = vector.broadcast %334 : f32 to vector<32x128xf32>
    %336 = arith.mulf %192, %335 : vector<32x128xf32>
    %337 = arith.addf %333, %336 : vector<32x128xf32>
    %c72 = arith.constant 72 : index
    %338 = memref.load %arg1[%c72] : memref<155xf32, #tpu.memory_space<smem>>
    %339 = vector.broadcast %338 : f32 to vector<32x128xf32>
    %340 = arith.mulf %215, %339 : vector<32x128xf32>
    %341 = arith.addf %337, %340 : vector<32x128xf32>
    %c73 = arith.constant 73 : index
    %342 = memref.load %arg1[%c73] : memref<155xf32, #tpu.memory_space<smem>>
    %343 = vector.broadcast %342 : f32 to vector<32x128xf32>
    %344 = arith.mulf %238, %343 : vector<32x128xf32>
    %345 = arith.addf %341, %344 : vector<32x128xf32>
    %c74 = arith.constant 74 : index
    %346 = memref.load %arg1[%c74] : memref<155xf32, #tpu.memory_space<smem>>
    %347 = vector.broadcast %346 : f32 to vector<32x128xf32>
    %348 = arith.mulf %261, %347 : vector<32x128xf32>
    %349 = arith.addf %345, %348 : vector<32x128xf32>
    %c143 = arith.constant 143 : index
    %350 = memref.load %arg1[%c143] : memref<155xf32, #tpu.memory_space<smem>>
    %351 = vector.broadcast %350 : f32 to vector<32x128xf32>
    %352 = arith.addf %349, %351 : vector<32x128xf32>
    %353 = math.tanh %352 : vector<32x128xf32>
    %c75 = arith.constant 75 : index
    %354 = memref.load %arg1[%c75] : memref<155xf32, #tpu.memory_space<smem>>
    %355 = vector.broadcast %354 : f32 to vector<32x128xf32>
    %356 = arith.mulf %169, %355 : vector<32x128xf32>
    %c76 = arith.constant 76 : index
    %357 = memref.load %arg1[%c76] : memref<155xf32, #tpu.memory_space<smem>>
    %358 = vector.broadcast %357 : f32 to vector<32x128xf32>
    %359 = arith.mulf %192, %358 : vector<32x128xf32>
    %360 = arith.addf %356, %359 : vector<32x128xf32>
    %c77 = arith.constant 77 : index
    %361 = memref.load %arg1[%c77] : memref<155xf32, #tpu.memory_space<smem>>
    %362 = vector.broadcast %361 : f32 to vector<32x128xf32>
    %363 = arith.mulf %215, %362 : vector<32x128xf32>
    %364 = arith.addf %360, %363 : vector<32x128xf32>
    %c78 = arith.constant 78 : index
    %365 = memref.load %arg1[%c78] : memref<155xf32, #tpu.memory_space<smem>>
    %366 = vector.broadcast %365 : f32 to vector<32x128xf32>
    %367 = arith.mulf %238, %366 : vector<32x128xf32>
    %368 = arith.addf %364, %367 : vector<32x128xf32>
    %c79 = arith.constant 79 : index
    %369 = memref.load %arg1[%c79] : memref<155xf32, #tpu.memory_space<smem>>
    %370 = vector.broadcast %369 : f32 to vector<32x128xf32>
    %371 = arith.mulf %261, %370 : vector<32x128xf32>
    %372 = arith.addf %368, %371 : vector<32x128xf32>
    %c144 = arith.constant 144 : index
    %373 = memref.load %arg1[%c144] : memref<155xf32, #tpu.memory_space<smem>>
    %374 = vector.broadcast %373 : f32 to vector<32x128xf32>
    %375 = arith.addf %372, %374 : vector<32x128xf32>
    %376 = math.tanh %375 : vector<32x128xf32>
    %c80 = arith.constant 80 : index
    %377 = memref.load %arg1[%c80] : memref<155xf32, #tpu.memory_space<smem>>
    %378 = vector.broadcast %377 : f32 to vector<32x128xf32>
    %379 = arith.mulf %284, %378 : vector<32x128xf32>
    %c81 = arith.constant 81 : index
    %380 = memref.load %arg1[%c81] : memref<155xf32, #tpu.memory_space<smem>>
    %381 = vector.broadcast %380 : f32 to vector<32x128xf32>
    %382 = arith.mulf %307, %381 : vector<32x128xf32>
    %383 = arith.addf %379, %382 : vector<32x128xf32>
    %c82 = arith.constant 82 : index
    %384 = memref.load %arg1[%c82] : memref<155xf32, #tpu.memory_space<smem>>
    %385 = vector.broadcast %384 : f32 to vector<32x128xf32>
    %386 = arith.mulf %330, %385 : vector<32x128xf32>
    %387 = arith.addf %383, %386 : vector<32x128xf32>
    %c83 = arith.constant 83 : index
    %388 = memref.load %arg1[%c83] : memref<155xf32, #tpu.memory_space<smem>>
    %389 = vector.broadcast %388 : f32 to vector<32x128xf32>
    %390 = arith.mulf %353, %389 : vector<32x128xf32>
    %391 = arith.addf %387, %390 : vector<32x128xf32>
    %c84 = arith.constant 84 : index
    %392 = memref.load %arg1[%c84] : memref<155xf32, #tpu.memory_space<smem>>
    %393 = vector.broadcast %392 : f32 to vector<32x128xf32>
    %394 = arith.mulf %376, %393 : vector<32x128xf32>
    %395 = arith.addf %391, %394 : vector<32x128xf32>
    %c145 = arith.constant 145 : index
    %396 = memref.load %arg1[%c145] : memref<155xf32, #tpu.memory_space<smem>>
    %397 = vector.broadcast %396 : f32 to vector<32x128xf32>
    %398 = arith.addf %395, %397 : vector<32x128xf32>
    %399 = math.tanh %398 : vector<32x128xf32>
    %c85 = arith.constant 85 : index
    %400 = memref.load %arg1[%c85] : memref<155xf32, #tpu.memory_space<smem>>
    %401 = vector.broadcast %400 : f32 to vector<32x128xf32>
    %402 = arith.mulf %284, %401 : vector<32x128xf32>
    %c86 = arith.constant 86 : index
    %403 = memref.load %arg1[%c86] : memref<155xf32, #tpu.memory_space<smem>>
    %404 = vector.broadcast %403 : f32 to vector<32x128xf32>
    %405 = arith.mulf %307, %404 : vector<32x128xf32>
    %406 = arith.addf %402, %405 : vector<32x128xf32>
    %c87 = arith.constant 87 : index
    %407 = memref.load %arg1[%c87] : memref<155xf32, #tpu.memory_space<smem>>
    %408 = vector.broadcast %407 : f32 to vector<32x128xf32>
    %409 = arith.mulf %330, %408 : vector<32x128xf32>
    %410 = arith.addf %406, %409 : vector<32x128xf32>
    %c88 = arith.constant 88 : index
    %411 = memref.load %arg1[%c88] : memref<155xf32, #tpu.memory_space<smem>>
    %412 = vector.broadcast %411 : f32 to vector<32x128xf32>
    %413 = arith.mulf %353, %412 : vector<32x128xf32>
    %414 = arith.addf %410, %413 : vector<32x128xf32>
    %c89 = arith.constant 89 : index
    %415 = memref.load %arg1[%c89] : memref<155xf32, #tpu.memory_space<smem>>
    %416 = vector.broadcast %415 : f32 to vector<32x128xf32>
    %417 = arith.mulf %376, %416 : vector<32x128xf32>
    %418 = arith.addf %414, %417 : vector<32x128xf32>
    %c146 = arith.constant 146 : index
    %419 = memref.load %arg1[%c146] : memref<155xf32, #tpu.memory_space<smem>>
    %420 = vector.broadcast %419 : f32 to vector<32x128xf32>
    %421 = arith.addf %418, %420 : vector<32x128xf32>
    %422 = math.tanh %421 : vector<32x128xf32>
    %c90 = arith.constant 90 : index
    %423 = memref.load %arg1[%c90] : memref<155xf32, #tpu.memory_space<smem>>
    %424 = vector.broadcast %423 : f32 to vector<32x128xf32>
    %425 = arith.mulf %284, %424 : vector<32x128xf32>
    %c91 = arith.constant 91 : index
    %426 = memref.load %arg1[%c91] : memref<155xf32, #tpu.memory_space<smem>>
    %427 = vector.broadcast %426 : f32 to vector<32x128xf32>
    %428 = arith.mulf %307, %427 : vector<32x128xf32>
    %429 = arith.addf %425, %428 : vector<32x128xf32>
    %c92 = arith.constant 92 : index
    %430 = memref.load %arg1[%c92] : memref<155xf32, #tpu.memory_space<smem>>
    %431 = vector.broadcast %430 : f32 to vector<32x128xf32>
    %432 = arith.mulf %330, %431 : vector<32x128xf32>
    %433 = arith.addf %429, %432 : vector<32x128xf32>
    %c93 = arith.constant 93 : index
    %434 = memref.load %arg1[%c93] : memref<155xf32, #tpu.memory_space<smem>>
    %435 = vector.broadcast %434 : f32 to vector<32x128xf32>
    %436 = arith.mulf %353, %435 : vector<32x128xf32>
    %437 = arith.addf %433, %436 : vector<32x128xf32>
    %c94 = arith.constant 94 : index
    %438 = memref.load %arg1[%c94] : memref<155xf32, #tpu.memory_space<smem>>
    %439 = vector.broadcast %438 : f32 to vector<32x128xf32>
    %440 = arith.mulf %376, %439 : vector<32x128xf32>
    %441 = arith.addf %437, %440 : vector<32x128xf32>
    %c147 = arith.constant 147 : index
    %442 = memref.load %arg1[%c147] : memref<155xf32, #tpu.memory_space<smem>>
    %443 = vector.broadcast %442 : f32 to vector<32x128xf32>
    %444 = arith.addf %441, %443 : vector<32x128xf32>
    %445 = math.tanh %444 : vector<32x128xf32>
    %c95 = arith.constant 95 : index
    %446 = memref.load %arg1[%c95] : memref<155xf32, #tpu.memory_space<smem>>
    %447 = vector.broadcast %446 : f32 to vector<32x128xf32>
    %448 = arith.mulf %284, %447 : vector<32x128xf32>
    %c96 = arith.constant 96 : index
    %449 = memref.load %arg1[%c96] : memref<155xf32, #tpu.memory_space<smem>>
    %450 = vector.broadcast %449 : f32 to vector<32x128xf32>
    %451 = arith.mulf %307, %450 : vector<32x128xf32>
    %452 = arith.addf %448, %451 : vector<32x128xf32>
    %c97 = arith.constant 97 : index
    %453 = memref.load %arg1[%c97] : memref<155xf32, #tpu.memory_space<smem>>
    %454 = vector.broadcast %453 : f32 to vector<32x128xf32>
    %455 = arith.mulf %330, %454 : vector<32x128xf32>
    %456 = arith.addf %452, %455 : vector<32x128xf32>
    %c98 = arith.constant 98 : index
    %457 = memref.load %arg1[%c98] : memref<155xf32, #tpu.memory_space<smem>>
    %458 = vector.broadcast %457 : f32 to vector<32x128xf32>
    %459 = arith.mulf %353, %458 : vector<32x128xf32>
    %460 = arith.addf %456, %459 : vector<32x128xf32>
    %c99 = arith.constant 99 : index
    %461 = memref.load %arg1[%c99] : memref<155xf32, #tpu.memory_space<smem>>
    %462 = vector.broadcast %461 : f32 to vector<32x128xf32>
    %463 = arith.mulf %376, %462 : vector<32x128xf32>
    %464 = arith.addf %460, %463 : vector<32x128xf32>
    %c148 = arith.constant 148 : index
    %465 = memref.load %arg1[%c148] : memref<155xf32, #tpu.memory_space<smem>>
    %466 = vector.broadcast %465 : f32 to vector<32x128xf32>
    %467 = arith.addf %464, %466 : vector<32x128xf32>
    %468 = math.tanh %467 : vector<32x128xf32>
    %c100 = arith.constant 100 : index
    %469 = memref.load %arg1[%c100] : memref<155xf32, #tpu.memory_space<smem>>
    %470 = vector.broadcast %469 : f32 to vector<32x128xf32>
    %471 = arith.mulf %284, %470 : vector<32x128xf32>
    %c101 = arith.constant 101 : index
    %472 = memref.load %arg1[%c101] : memref<155xf32, #tpu.memory_space<smem>>
    %473 = vector.broadcast %472 : f32 to vector<32x128xf32>
    %474 = arith.mulf %307, %473 : vector<32x128xf32>
    %475 = arith.addf %471, %474 : vector<32x128xf32>
    %c102 = arith.constant 102 : index
    %476 = memref.load %arg1[%c102] : memref<155xf32, #tpu.memory_space<smem>>
    %477 = vector.broadcast %476 : f32 to vector<32x128xf32>
    %478 = arith.mulf %330, %477 : vector<32x128xf32>
    %479 = arith.addf %475, %478 : vector<32x128xf32>
    %c103 = arith.constant 103 : index
    %480 = memref.load %arg1[%c103] : memref<155xf32, #tpu.memory_space<smem>>
    %481 = vector.broadcast %480 : f32 to vector<32x128xf32>
    %482 = arith.mulf %353, %481 : vector<32x128xf32>
    %483 = arith.addf %479, %482 : vector<32x128xf32>
    %c104 = arith.constant 104 : index
    %484 = memref.load %arg1[%c104] : memref<155xf32, #tpu.memory_space<smem>>
    %485 = vector.broadcast %484 : f32 to vector<32x128xf32>
    %486 = arith.mulf %376, %485 : vector<32x128xf32>
    %487 = arith.addf %483, %486 : vector<32x128xf32>
    %c149 = arith.constant 149 : index
    %488 = memref.load %arg1[%c149] : memref<155xf32, #tpu.memory_space<smem>>
    %489 = vector.broadcast %488 : f32 to vector<32x128xf32>
    %490 = arith.addf %487, %489 : vector<32x128xf32>
    %491 = math.tanh %490 : vector<32x128xf32>
    %c105 = arith.constant 105 : index
    %492 = memref.load %arg1[%c105] : memref<155xf32, #tpu.memory_space<smem>>
    %493 = vector.broadcast %492 : f32 to vector<32x128xf32>
    %494 = arith.mulf %399, %493 : vector<32x128xf32>
    %c106 = arith.constant 106 : index
    %495 = memref.load %arg1[%c106] : memref<155xf32, #tpu.memory_space<smem>>
    %496 = vector.broadcast %495 : f32 to vector<32x128xf32>
    %497 = arith.mulf %422, %496 : vector<32x128xf32>
    %498 = arith.addf %494, %497 : vector<32x128xf32>
    %c107 = arith.constant 107 : index
    %499 = memref.load %arg1[%c107] : memref<155xf32, #tpu.memory_space<smem>>
    %500 = vector.broadcast %499 : f32 to vector<32x128xf32>
    %501 = arith.mulf %445, %500 : vector<32x128xf32>
    %502 = arith.addf %498, %501 : vector<32x128xf32>
    %c108 = arith.constant 108 : index
    %503 = memref.load %arg1[%c108] : memref<155xf32, #tpu.memory_space<smem>>
    %504 = vector.broadcast %503 : f32 to vector<32x128xf32>
    %505 = arith.mulf %468, %504 : vector<32x128xf32>
    %506 = arith.addf %502, %505 : vector<32x128xf32>
    %c109 = arith.constant 109 : index
    %507 = memref.load %arg1[%c109] : memref<155xf32, #tpu.memory_space<smem>>
    %508 = vector.broadcast %507 : f32 to vector<32x128xf32>
    %509 = arith.mulf %491, %508 : vector<32x128xf32>
    %510 = arith.addf %506, %509 : vector<32x128xf32>
    %c150 = arith.constant 150 : index
    %511 = memref.load %arg1[%c150] : memref<155xf32, #tpu.memory_space<smem>>
    %512 = vector.broadcast %511 : f32 to vector<32x128xf32>
    %513 = arith.addf %510, %512 : vector<32x128xf32>
    %c110 = arith.constant 110 : index
    %514 = memref.load %arg1[%c110] : memref<155xf32, #tpu.memory_space<smem>>
    %515 = vector.broadcast %514 : f32 to vector<32x128xf32>
    %516 = arith.mulf %399, %515 : vector<32x128xf32>
    %c111 = arith.constant 111 : index
    %517 = memref.load %arg1[%c111] : memref<155xf32, #tpu.memory_space<smem>>
    %518 = vector.broadcast %517 : f32 to vector<32x128xf32>
    %519 = arith.mulf %422, %518 : vector<32x128xf32>
    %520 = arith.addf %516, %519 : vector<32x128xf32>
    %c112 = arith.constant 112 : index
    %521 = memref.load %arg1[%c112] : memref<155xf32, #tpu.memory_space<smem>>
    %522 = vector.broadcast %521 : f32 to vector<32x128xf32>
    %523 = arith.mulf %445, %522 : vector<32x128xf32>
    %524 = arith.addf %520, %523 : vector<32x128xf32>
    %c113 = arith.constant 113 : index
    %525 = memref.load %arg1[%c113] : memref<155xf32, #tpu.memory_space<smem>>
    %526 = vector.broadcast %525 : f32 to vector<32x128xf32>
    %527 = arith.mulf %468, %526 : vector<32x128xf32>
    %528 = arith.addf %524, %527 : vector<32x128xf32>
    %c114 = arith.constant 114 : index
    %529 = memref.load %arg1[%c114] : memref<155xf32, #tpu.memory_space<smem>>
    %530 = vector.broadcast %529 : f32 to vector<32x128xf32>
    %531 = arith.mulf %491, %530 : vector<32x128xf32>
    %532 = arith.addf %528, %531 : vector<32x128xf32>
    %c151 = arith.constant 151 : index
    %533 = memref.load %arg1[%c151] : memref<155xf32, #tpu.memory_space<smem>>
    %534 = vector.broadcast %533 : f32 to vector<32x128xf32>
    %535 = arith.addf %532, %534 : vector<32x128xf32>
    %c115 = arith.constant 115 : index
    %536 = memref.load %arg1[%c115] : memref<155xf32, #tpu.memory_space<smem>>
    %537 = vector.broadcast %536 : f32 to vector<32x128xf32>
    %538 = arith.mulf %399, %537 : vector<32x128xf32>
    %c116 = arith.constant 116 : index
    %539 = memref.load %arg1[%c116] : memref<155xf32, #tpu.memory_space<smem>>
    %540 = vector.broadcast %539 : f32 to vector<32x128xf32>
    %541 = arith.mulf %422, %540 : vector<32x128xf32>
    %542 = arith.addf %538, %541 : vector<32x128xf32>
    %c117 = arith.constant 117 : index
    %543 = memref.load %arg1[%c117] : memref<155xf32, #tpu.memory_space<smem>>
    %544 = vector.broadcast %543 : f32 to vector<32x128xf32>
    %545 = arith.mulf %445, %544 : vector<32x128xf32>
    %546 = arith.addf %542, %545 : vector<32x128xf32>
    %c118 = arith.constant 118 : index
    %547 = memref.load %arg1[%c118] : memref<155xf32, #tpu.memory_space<smem>>
    %548 = vector.broadcast %547 : f32 to vector<32x128xf32>
    %549 = arith.mulf %468, %548 : vector<32x128xf32>
    %550 = arith.addf %546, %549 : vector<32x128xf32>
    %c119 = arith.constant 119 : index
    %551 = memref.load %arg1[%c119] : memref<155xf32, #tpu.memory_space<smem>>
    %552 = vector.broadcast %551 : f32 to vector<32x128xf32>
    %553 = arith.mulf %491, %552 : vector<32x128xf32>
    %554 = arith.addf %550, %553 : vector<32x128xf32>
    %c152 = arith.constant 152 : index
    %555 = memref.load %arg1[%c152] : memref<155xf32, #tpu.memory_space<smem>>
    %556 = vector.broadcast %555 : f32 to vector<32x128xf32>
    %557 = arith.addf %554, %556 : vector<32x128xf32>
    %c120 = arith.constant 120 : index
    %558 = memref.load %arg1[%c120] : memref<155xf32, #tpu.memory_space<smem>>
    %559 = vector.broadcast %558 : f32 to vector<32x128xf32>
    %560 = arith.mulf %399, %559 : vector<32x128xf32>
    %c121 = arith.constant 121 : index
    %561 = memref.load %arg1[%c121] : memref<155xf32, #tpu.memory_space<smem>>
    %562 = vector.broadcast %561 : f32 to vector<32x128xf32>
    %563 = arith.mulf %422, %562 : vector<32x128xf32>
    %564 = arith.addf %560, %563 : vector<32x128xf32>
    %c122 = arith.constant 122 : index
    %565 = memref.load %arg1[%c122] : memref<155xf32, #tpu.memory_space<smem>>
    %566 = vector.broadcast %565 : f32 to vector<32x128xf32>
    %567 = arith.mulf %445, %566 : vector<32x128xf32>
    %568 = arith.addf %564, %567 : vector<32x128xf32>
    %c123 = arith.constant 123 : index
    %569 = memref.load %arg1[%c123] : memref<155xf32, #tpu.memory_space<smem>>
    %570 = vector.broadcast %569 : f32 to vector<32x128xf32>
    %571 = arith.mulf %468, %570 : vector<32x128xf32>
    %572 = arith.addf %568, %571 : vector<32x128xf32>
    %c124 = arith.constant 124 : index
    %573 = memref.load %arg1[%c124] : memref<155xf32, #tpu.memory_space<smem>>
    %574 = vector.broadcast %573 : f32 to vector<32x128xf32>
    %575 = arith.mulf %491, %574 : vector<32x128xf32>
    %576 = arith.addf %572, %575 : vector<32x128xf32>
    %c153 = arith.constant 153 : index
    %577 = memref.load %arg1[%c153] : memref<155xf32, #tpu.memory_space<smem>>
    %578 = vector.broadcast %577 : f32 to vector<32x128xf32>
    %579 = arith.addf %576, %578 : vector<32x128xf32>
    %c125 = arith.constant 125 : index
    %580 = memref.load %arg1[%c125] : memref<155xf32, #tpu.memory_space<smem>>
    %581 = vector.broadcast %580 : f32 to vector<32x128xf32>
    %582 = arith.mulf %399, %581 : vector<32x128xf32>
    %c126 = arith.constant 126 : index
    %583 = memref.load %arg1[%c126] : memref<155xf32, #tpu.memory_space<smem>>
    %584 = vector.broadcast %583 : f32 to vector<32x128xf32>
    %585 = arith.mulf %422, %584 : vector<32x128xf32>
    %586 = arith.addf %582, %585 : vector<32x128xf32>
    %c127 = arith.constant 127 : index
    %587 = memref.load %arg1[%c127] : memref<155xf32, #tpu.memory_space<smem>>
    %588 = vector.broadcast %587 : f32 to vector<32x128xf32>
    %589 = arith.mulf %445, %588 : vector<32x128xf32>
    %590 = arith.addf %586, %589 : vector<32x128xf32>
    %c128 = arith.constant 128 : index
    %591 = memref.load %arg1[%c128] : memref<155xf32, #tpu.memory_space<smem>>
    %592 = vector.broadcast %591 : f32 to vector<32x128xf32>
    %593 = arith.mulf %468, %592 : vector<32x128xf32>
    %594 = arith.addf %590, %593 : vector<32x128xf32>
    %c129 = arith.constant 129 : index
    %595 = memref.load %arg1[%c129] : memref<155xf32, #tpu.memory_space<smem>>
    %596 = vector.broadcast %595 : f32 to vector<32x128xf32>
    %597 = arith.mulf %491, %596 : vector<32x128xf32>
    %598 = arith.addf %594, %597 : vector<32x128xf32>
    %c154 = arith.constant 154 : index
    %599 = memref.load %arg1[%c154] : memref<155xf32, #tpu.memory_space<smem>>
    %600 = vector.broadcast %599 : f32 to vector<32x128xf32>
    %601 = arith.addf %598, %600 : vector<32x128xf32>
    %c0_18 = arith.constant 0 : index
    %c0_19 = arith.constant 0 : index
    %c0_20 = arith.constant 0 : index
    %602 = vector.load %arg3[%c0_18, %c0_19, %c0_20] : memref<5x32x128xf32, #tpu.memory_space<vmem>>, vector<1x32x128xf32>
    %603 = vector.shape_cast %602 : vector<1x32x128xf32> to vector<32x128xf32>
    %604 = vector.shape_cast %513 : vector<32x128xf32> to vector<1x32x128xf32>
    tpu.vector_store %arg3[%c0_18, %c0_19, %c0_20], %604 {strides = array<i32>} : memref<5x32x128xf32, #tpu.memory_space<vmem>>, vector<1x32x128xf32>,
    %c1_21 = arith.constant 1 : index
    %c0_22 = arith.constant 0 : index
    %c0_23 = arith.constant 0 : index
    %605 = vector.load %arg3[%c1_21, %c0_22, %c0_23] : memref<5x32x128xf32, #tpu.memory_space<vmem>>, vector<1x32x128xf32>
    %606 = vector.shape_cast %605 : vector<1x32x128xf32> to vector<32x128xf32>
    %607 = vector.shape_cast %535 : vector<32x128xf32> to vector<1x32x128xf32>
    tpu.vector_store %arg3[%c1_21, %c0_22, %c0_23], %607 {strides = array<i32>} : memref<5x32x128xf32, #tpu.memory_space<vmem>>, vector<1x32x128xf32>,
    %c2_24 = arith.constant 2 : index
    %c0_25 = arith.constant 0 : index
    %c0_26 = arith.constant 0 : index
    %608 = vector.load %arg3[%c2_24, %c0_25, %c0_26] : memref<5x32x128xf32, #tpu.memory_space<vmem>>, vector<1x32x128xf32>
    %609 = vector.shape_cast %608 : vector<1x32x128xf32> to vector<32x128xf32>
    %610 = vector.shape_cast %557 : vector<32x128xf32> to vector<1x32x128xf32>
    tpu.vector_store %arg3[%c2_24, %c0_25, %c0_26], %610 {strides = array<i32>} : memref<5x32x128xf32, #tpu.memory_space<vmem>>, vector<1x32x128xf32>,
    %c3_27 = arith.constant 3 : index
    %c0_28 = arith.constant 0 : index
    %c0_29 = arith.constant 0 : index
    %611 = vector.load %arg3[%c3_27, %c0_28, %c0_29] : memref<5x32x128xf32, #tpu.memory_space<vmem>>, vector<1x32x128xf32>
    %612 = vector.shape_cast %611 : vector<1x32x128xf32> to vector<32x128xf32>
    %613 = vector.shape_cast %579 : vector<32x128xf32> to vector<1x32x128xf32>
    tpu.vector_store %arg3[%c3_27, %c0_28, %c0_29], %613 {strides = array<i32>} : memref<5x32x128xf32, #tpu.memory_space<vmem>>, vector<1x32x128xf32>,
    %c4_30 = arith.constant 4 : index
    %c0_31 = arith.constant 0 : index
    %c0_32 = arith.constant 0 : index
    %614 = vector.load %arg3[%c4_30, %c0_31, %c0_32] : memref<5x32x128xf32, #tpu.memory_space<vmem>>, vector<1x32x128xf32>
    %615 = vector.shape_cast %614 : vector<1x32x128xf32> to vector<32x128xf32>
    %616 = vector.shape_cast %601 : vector<32x128xf32> to vector<1x32x128xf32>
    tpu.vector_store %arg3[%c4_30, %c0_31, %c0_32], %616 {strides = array<i32>} : memref<5x32x128xf32, #tpu.memory_space<vmem>>, vector<1x32x128xf32>,
    return
  }
  func.func @transform_0(%arg0: i32) -> i32 {
    %c0_i32 = arith.constant 0 : i32
    %c0_i32_0 = arith.constant 0 : i32
    return %c0_i32 : i32
  }
  func.func @transform_1(%arg0: i32) -> (i32, i32, i32) {
    %c0_i32 = arith.constant 0 : i32
    %c0_i32_0 = arith.constant 0 : i32
    %c0_i32_1 = arith.constant 0 : i32
    return %c0_i32, %arg0, %c0_i32_0 : i32, i32, i32
  }
  func.func @transform_2(%arg0: i32) -> (i32, i32, i32) {
    %c0_i32 = arith.constant 0 : i32
    %c0_i32_0 = arith.constant 0 : i32
    %c0_i32_1 = arith.constant 0 : i32
    return %c0_i32, %arg0, %c0_i32_0 : i32, i32, i32
  }
}

</mosaic_0001>

<llo_original>
// kernel: tpu_custom_call.1
$region0: #{tpu_custom_call.1}
  #allocation0 [shape = 'u32[]', space=smem, size = 0x4, offset = 0x4, fixed_abs, tag = 'smem constant byte address 0x4 - core index']
  #allocation1 [shape = 'u32[144,128]{1,0:T(1,128)}', space=vmem, size = 0x12000, scoped, tag = 'internal scratch']
  #allocation8 [shape = 's32[]', space=sflag, size = 0x4, offset = 0, fixed_abs, tag = 'sflag constant byte address 0x0 - dummy sync flag']
  #allocation10 [shape = 's32[]', space=sflag, size = 0x4, offset = 0, fixed_abs, tag = 'sflag constant byte address 0x0 - dummy sync flag']
  %s0 = inlined_call_operand.hbm [shape: f32[155], index: 0, kind: input, shape index: {}]
  %s1 = inlined_call_operand.hbm [shape: f32[6,64,128], index: 1, kind: input, shape index: {}]
  %s2 = inlined_call_operand.hbm [shape: f32[5,64,128], index: 2, kind: output, shape index: {}]
  %s3 = sld [smem:[#allocation0]]
  $region49: #{tpu_custom_call.1} parent=0
    _
  %s5 = ssub.s32 1, %s3
  %s6 = scalar_select 0, %s5, %s3
  $region1: #{tpu_custom_call.1} parent=0
    #allocation2 [shape = 'u8[1024]{0}', space=smem, size = 0x400, scoped, tag = 'input window, operand 0, single buffered']
    #allocation3 [shape = 's32[2]{0}', space=sflag, size = 0x8, scoped, tag = 'scoped memory for tpu_custom_call.1']
    #allocation4 [shape = 's32[2]{0}', space=sflag, size = 0x8, scoped, tag = 'scoped memory for tpu_custom_call.1']
    #allocation5 [shape = 's32[2]{0}', space=sflag, size = 0x8, scoped, tag = 'scoped memory for tpu_custom_call.1']
    #allocation6 [shape = 'u8[196608]{0}', space=vmem, size = 0x30000, scoped, tag = 'input window, operand 1']
    #allocation7 [shape = 'u8[163840]{0}', space=vmem, size = 0x28000, scoped, tag = 'output window, operand 0']
    %7 = vsyncpa [#allocation5], 0
    %8 = vsyncpa [#allocation3], 0
    %s9 = scalar_lea.sflag [#allocation3], 1
    %10 = vsyncpa %s9, 0
    %11 = vsyncpa [#allocation4], 0
    %s12 = scalar_lea.sflag [#allocation4], 1
    %13 = vsyncpa %s12, 0
    loop: start=0, step=1, limit=4
    $region2: #{tpu_custom_call.1} parent=1 // loop_pre_header
      _
    $region3: #{tpu_custom_call.1} parent=1 // loop_header
      %s15 = sphi 0, %s19
      %p16 = scmp.ge.s32.totalorder %s15, 4
      %s23 = sphi 0, %s23
      %s25 = sphi 0, %s23
      %s26 = sphi 0, %s25
      %s40 = sphi 0, %s26
      %s46 = sphi 0, %s48
      %s49 = sphi 0, %s46
      %s50 = sphi 0, %s49
      %s66 = sphi 0, %s50
      %s72 = sphi 0, %s74
      %s75 = sphi 0, %s72
      %s76 = sphi 0, %s75
      %s92 = sphi 0, %s76
    $region4: #{tpu_custom_call.1} parent=1 // loop_header_branch
      %18 = sbr.rel (%p16) target = $region8
    $region5: #{tpu_custom_call.1} parent=1 // loop_body
      %s20 = ssub.s32 %s15, 1
      %s21 = ssub.s32 %s15, 2
      %s22 = sadd.s32 %s15, 1
      %s24 = sadd.s32 %s23, 1
      %p27 = scmp.eq.s32.totalorder %s15, 1
      %p28 = scmp.ne.s32.totalorder %s23, %s25
      %p29 = scmp.eq.s32.totalorder %s15, 0
      %p30 = por %p28, %p29
      %p31 = scmp.ne.s32.totalorder %s23, %s25
      %p32 = scmp.eq.s32.totalorder %s20, 1
      %p33 = por %p31, %p32
      %p34 = scmp.ne.s32.totalorder %s25, %s26
      %p35 = scmp.eq.s32.totalorder %s20, 0
      %p36 = por %p34, %p35
      %p37 = scmp.ne.s32.totalorder %s25, %s26
      %p38 = scmp.eq.s32.totalorder %s21, 1
      %p39 = por %p37, %p38
      %p41 = scmp.ne.s32.totalorder %s26, %s40
      %p42 = scmp.eq.s32.totalorder %s21, 0
      %p43 = por %p41, %p42
      %s44 = ssub.s32 %s15, %s22
      %p45 = scmp.eq.s32.totalorder %s44, 0
      %s47 = sadd.s32 %s46, 1
      %s48 = scalar_select %p45, %s46, %s47
      %p51 = pneg %p45
      %p52 = scmp.eq.s32.totalorder %s15, 1
      %p53 = por %p51, %p52
      %p54 = scmp.ne.s32.totalorder %s46, %s49
      %p55 = scmp.eq.s32.totalorder %s15, 0
      %p56 = por %p54, %p55
      %p57 = scmp.ne.s32.totalorder %s46, %s49
      %p58 = scmp.eq.s32.totalorder %s20, 1
      %p59 = por %p57, %p58
      %p60 = scmp.ne.s32.totalorder %s49, %s50
      %p61 = scmp.eq.s32.totalorder %s20, 0
      %p62 = por %p60, %p61
      %p63 = scmp.ne.s32.totalorder %s49, %s50
      %p64 = scmp.eq.s32.totalorder %s21, 1
      %p65 = por %p63, %p64
      %p67 = scmp.ne.s32.totalorder %s50, %s66
      %p68 = scmp.eq.s32.totalorder %s21, 0
      %p69 = por %p67, %p68
      %s70 = ssub.s32 %s15, %s22
      %p71 = scmp.eq.s32.totalorder %s70, 0
      %s73 = sadd.s32 %s72, 1
      %s74 = scalar_select %p71, %s72, %s73
      %p77 = pneg %p71
      %p78 = scmp.eq.s32.totalorder %s15, 1
      %p79 = por %p77, %p78
      %p80 = scmp.ne.s32.totalorder %s72, %s75
      %p81 = scmp.eq.s32.totalorder %s15, 0
      %p82 = por %p80, %p81
      %p83 = scmp.ne.s32.totalorder %s72, %s75
      %p84 = scmp.eq.s32.totalorder %s20, 1
      %p85 = por %p83, %p84
      %p86 = scmp.ne.s32.totalorder %s75, %s76
      %p87 = scmp.eq.s32.totalorder %s20, 0
      %p88 = por %p86, %p87
      %p89 = scmp.ne.s32.totalorder %s75, %s76
      %p90 = scmp.eq.s32.totalorder %s21, 1
      %p91 = por %p89, %p90
      %p93 = scmp.ne.s32.totalorder %s76, %s92
      %p94 = scmp.eq.s32.totalorder %s21, 0
      %p95 = por %p93, %p94
      %p96 = scmp.le.s32.totalorder 1, %s15
      %p97 = scmp.lt.s32.totalorder %s15, 3
      %p98 = pnand %p96, %p97
      %p99 = pneg %p98
      // Predicated region
      $region9: #{tpu_custom_call.1} parent=5 // pred_check
        _
      $region10: #{tpu_custom_call.1} parent=5 // pred_check_branch
        %101 = sbr.rel (%p98) target = $region12
      $region11: #{tpu_custom_call.1} parent=5 // pred_region
        %s102 = ssub.s32 %s15, 1
        // Predicated region
        $region13: #{tpu_custom_call.1} parent=11 // pred_check
          %p103 = pneg %p36
        $region14: #{tpu_custom_call.1} parent=11 // pred_check_branch
          %105 = sbr.rel (%p103) target = $region16
        $region15: #{tpu_custom_call.1} parent=11 // pred_region
          %s107 = ssub.s32 32, 32
          %108 = vsyncadd [#allocation5], %s107
          %111 = dma.hbm_to_smem %s0, 32, [#allocation2], [#allocation5]
        $region16: #{tpu_custom_call.1} parent=11 // pred_fallthru
          _
      $region12: #{tpu_custom_call.1} parent=5 // pred_fallthru
        _
      %p112 = scmp.lt.s32.totalorder %s15, 2
      // Predicated region
      $region17: #{tpu_custom_call.1} parent=5 // pred_check
        %p113 = pneg %p112
      $region18: #{tpu_custom_call.1} parent=5 // pred_check_branch
        %115 = sbr.rel (%p113) target = $region20
      $region19: #{tpu_custom_call.1} parent=5 // pred_region
        // Predicated region
        $region21: #{tpu_custom_call.1} parent=19 // pred_check
          %p116 = pneg %p56
        $region22: #{tpu_custom_call.1} parent=19 // pred_check_branch
          %118 = sbr.rel (%p116) target = $region24
        $region23: #{tpu_custom_call.1} parent=19 // pred_region
          #allocation9 [shape = 'u32[6]{0}', space=smem, size = 0x18, scoped, tag = 'DMA stride descriptor']
          %s119 = sand.u32 %s46, 1
          %s120 = scalar_lea.sflag [#allocation3], %s119
          %s121 = sand.u32 %s46, 1
          %s122 = smul.addr %s121, 192
          %s123 = scalar_lea.vmem [#allocation6], %s122
          %s124 = smul.u32 4, %s15
          %s126 = ssub.s32 3072, 3072
          %127 = vsyncadd %s120, %s126
          %s128 = smul.addr %s124, 128
          %s129 = scalar_lea.hbm %s1, %s128
          %s131 = sshll.u32 1, 14
          %s132 = sxor.u32 4294967295, %s131
          %s134 = sld [smem:[#allocation0]]
          %s135 = sadd.s32 2, %s134
          %s137 = sshll.u32 7, 26
          %s138 = sxor.u32 4294967295, %s137
          %s139 = sand.u32 0, %s138
          %s140 = sshll.u32 %s135, 26
          %s141 = sor.u32 %s139, %s140
          %s142 = sshll.u32 %s123, 4
          %s143 = int_to_ptr.vmem [resolvable:$true] %s142
          %149 = sst [smem:[#allocation9]] 1024
          %s150 = scalar_lea.smem [#allocation9], 1
          %151 = sst [smem:[%s150]] 512
          %s152 = scalar_lea.smem [#allocation9], 2
          %153 = sst [smem:[%s152]] 4
          %s154 = scalar_lea.smem [#allocation9], 3
          %155 = sst [smem:[%s154]] 128
          %s156 = scalar_lea.smem [#allocation9], 4
          %157 = sst [smem:[%s156]] 128
          %s158 = scalar_lea.smem [#allocation9], 5
          %159 = sst [smem:[%s158]] 8
          %161 = dma.general %s129, 3072, %s143, %s120, [#allocation8], [#allocation9], %s141, 0
        $region24: #{tpu_custom_call.1} parent=19 // pred_fallthru
          _
      $region20: #{tpu_custom_call.1} parent=5 // pred_fallthru
        _
      %p162 = scmp.le.s32.totalorder 1, %s15
      %p163 = scmp.lt.s32.totalorder %s15, 3
      %p164 = pnand %p162, %p163
      %p165 = pneg %p164
      // Predicated region
      $region25: #{tpu_custom_call.1} parent=5 // pred_check
        _
      $region26: #{tpu_custom_call.1} parent=5 // pred_check_branch
        %167 = sbr.rel (%p164) target = $region28
      $region27: #{tpu_custom_call.1} parent=5 // pred_region
        %s168 = ssub.s32 %s15, 1
        // Predicated region
        $region29: #{tpu_custom_call.1} parent=27 // pred_check
          %p169 = pneg %p36
        $region30: #{tpu_custom_call.1} parent=27 // pred_check_branch
          %171 = sbr.rel (%p169) target = $region32
        $region31: #{tpu_custom_call.1} parent=27 // pred_region
          %172 = dma.done [#allocation5], 32
        $region32: #{tpu_custom_call.1} parent=27 // pred_fallthru
          _
        %s173 = sand.u32 %s49, 1
        %s174 = scalar_lea.sflag [#allocation3], %s173
        %s175 = sand.u32 %s49, 1
        %s176 = smul.addr %s175, 192
        %s177 = scalar_lea.vmem [#allocation6], %s176
        // Predicated region
        $region33: #{tpu_custom_call.1} parent=27 // pred_check
          %p178 = pneg %p62
        $region34: #{tpu_custom_call.1} parent=27 // pred_check_branch
          %180 = sbr.rel (%p178) target = $region36
        $region35: #{tpu_custom_call.1} parent=27 // pred_region
          %181 = dma.done %s174, 3072
        $region36: #{tpu_custom_call.1} parent=27 // pred_fallthru
          _
        %182 = sfence
        %p183 = pneg %p36
        %p184 = pneg %p33
        %s185 = sand.u32 %s49, 1
        %s186 = scalar_lea.sflag [#allocation3], %s185
        %s187 = sand.u32 %s49, 1
        %s188 = smul.addr %s187, 192
        %s189 = scalar_lea.vmem [#allocation6], %s188
        %p190 = pneg %p62
        %p191 = pneg %p59
        %p192 = pneg %p88
        %p193 = pneg %p85
        %s194 = sand.u32 %s75, 1
        %s195 = scalar_lea.sflag [#allocation4], %s194
        %s196 = sand.u32 %s75, 1
        %s197 = smul.addr %s196, 160
        %s198 = scalar_lea.vmem [#allocation7], %s197
        %s199 = smul.u32 4, %s20
        %s200 = smul.u32 4, %s20
        %v201 = vld [vmem:[%s177] sm:$0xff]
        %v202 = vld [vmem:[%s177 + $0x8] sm:$0xff]
        %v203 = vld [vmem:[%s177 + $0x10] sm:$0xff]
        %v204 = vld [vmem:[%s177 + $0x18] sm:$0xff]
        %s205 = scalar_lea.vmem %s177, 32 [#allocation6]
        %v206 = vld [vmem:[%s205] sm:$0xff]
        %v207 = vld [vmem:[%s205 + $0x8] sm:$0xff]
        %v208 = vld [vmem:[%s205 + $0x10] sm:$0xff]
        %v209 = vld [vmem:[%s205 + $0x18] sm:$0xff]
        %s210 = scalar_lea.vmem %s177, 64 [#allocation6]
        %v211 = vld [vmem:[%s210] sm:$0xff]
        %v212 = vld [vmem:[%s210 + $0x8] sm:$0xff]
        %v213 = vld [vmem:[%s210 + $0x10] sm:$0xff]
        %v214 = vld [vmem:[%s210 + $0x18] sm:$0xff]
        %s215 = scalar_lea.vmem %s177, 96 [#allocation6]
        %v216 = vld [vmem:[%s215] sm:$0xff]
        %v217 = vld [vmem:[%s215 + $0x8] sm:$0xff]
        %v218 = vld [vmem:[%s215 + $0x10] sm:$0xff]
        %v219 = vld [vmem:[%s215 + $0x18] sm:$0xff]
        %s220 = scalar_lea.vmem %s177, 128 [#allocation6]
        %v221 = vld [vmem:[%s220] sm:$0xff]
        %v222 = vld [vmem:[%s220 + $0x8] sm:$0xff]
        %v223 = vld [vmem:[%s220 + $0x10] sm:$0xff]
        %v224 = vld [vmem:[%s220 + $0x18] sm:$0xff]
        %s225 = scalar_lea.vmem %s177, 160 [#allocation6]
        %v226 = vld [vmem:[%s225] sm:$0xff]
        %v227 = vld [vmem:[%s225 + $0x8] sm:$0xff]
        %v228 = vld [vmem:[%s225 + $0x10] sm:$0xff]
        %v229 = vld [vmem:[%s225 + $0x18] sm:$0xff]
        %s230 = sld [smem:[#allocation2]]
        %v231 = vstv %s230
        %v232 = vmul.f32 %v201, %v231
        %v233 = vmul.f32 %v202, %v231
        %v234 = vmul.f32 %v203, %v231
        %v235 = vmul.f32 %v204, %v231
        %s236 = sld [smem:[#allocation2 + $0x1]]
        %v237 = vstv %s236
        %v238 = vmul.f32 %v206, %v237
        %v239 = vmul.f32 %v207, %v237
        %v240 = vmul.f32 %v208, %v237
        %v241 = vmul.f32 %v209, %v237
        %v242 = vadd.f32 %v232, %v238
        %v243 = vadd.f32 %v233, %v239
        %v244 = vadd.f32 %v234, %v240
        %v245 = vadd.f32 %v235, %v241
        %s246 = sld [smem:[#allocation2 + $0x2]]
        %v247 = vstv %s246
        %v248 = vmul.f32 %v211, %v247
        %v249 = vmul.f32 %v212, %v247
        %v250 = vmul.f32 %v213, %v247
        %v251 = vmul.f32 %v214, %v247
        %v252 = vadd.f32 %v242, %v248
        %v253 = vadd.f32 %v243, %v249
        %v254 = vadd.f32 %v244, %v250
        %v255 = vadd.f32 %v245, %v251
        %s256 = sld [smem:[#allocation2 + $0x3]]
        %v257 = vstv %s256
        %v258 = vmul.f32 %v216, %v257
        %v259 = vmul.f32 %v217, %v257
        %v260 = vmul.f32 %v218, %v257
        %v261 = vmul.f32 %v219, %v257
        %v262 = vadd.f32 %v252, %v258
        %v263 = vadd.f32 %v253, %v259
        %v264 = vadd.f32 %v254, %v260
        %v265 = vadd.f32 %v255, %v261
        %s266 = sld [smem:[#allocation2 + $0x4]]
        %v267 = vstv %s266
        %v268 = vmul.f32 %v221, %v267
        %v269 = vmul.f32 %v222, %v267
        %v270 = vmul.f32 %v223, %v267
        %v271 = vmul.f32 %v224, %v267
        %v272 = vadd.f32 %v262, %v268
        %v273 = vadd.f32 %v263, %v269
        %v274 = vadd.f32 %v264, %v270
        %v275 = vadd.f32 %v265, %v271
        %s276 = sld [smem:[#allocation2 + $0x5]]
        %v277 = vstv %s276
        %v278 = vmul.f32 %v226, %v277
        %v279 = vmul.f32 %v227, %v277
        %v280 = vmul.f32 %v228, %v277
        %v281 = vmul.f32 %v229, %v277
        %v282 = vadd.f32 %v272, %v278
        %v283 = vadd.f32 %v273, %v279
        %v284 = vadd.f32 %v274, %v280
        %v285 = vadd.f32 %v275, %v281
        %s286 = sld [smem:[#allocation2 + $0x82]]
        %v287 = vstv %s286
        %v288 = vadd.f32 %v282, %v287
        %v289 = vadd.f32 %v283, %v287
        %v290 = vadd.f32 %v284, %v287
        %v291 = vadd.f32 %v285, %v287
        %v292 = vtanh.pop %v288
        %v293 = vtanh.pop %v289
        %v294 = vtanh.pop %v290
        %v295 = vtanh.pop %v291
        %s296 = sld [smem:[#allocation2 + $0x6]]
        %v297 = vstv %s296
        %v298 = vmul.f32 %v201, %v297
        %v299 = vmul.f32 %v202, %v297
        %v300 = vmul.f32 %v203, %v297
        %v301 = vmul.f32 %v204, %v297
        %s302 = sld [smem:[#allocation2 + $0x7]]
        %v303 = vstv %s302
        %v304 = vmul.f32 %v206, %v303
        %v305 = vmul.f32 %v207, %v303
        %v306 = vmul.f32 %v208, %v303
        %v307 = vmul.f32 %v209, %v303
        %v308 = vadd.f32 %v298, %v304
        %v309 = vadd.f32 %v299, %v305
        %v310 = vadd.f32 %v300, %v306
        %v311 = vadd.f32 %v301, %v307
        %s312 = sld [smem:[#allocation2 + $0x8]]
        %v313 = vstv %s312
        %v314 = vmul.f32 %v211, %v313
        %v315 = vmul.f32 %v212, %v313
        %v316 = vmul.f32 %v213, %v313
        %v317 = vmul.f32 %v214, %v313
        %v318 = vadd.f32 %v308, %v314
        %v319 = vadd.f32 %v309, %v315
        %v320 = vadd.f32 %v310, %v316
        %v321 = vadd.f32 %v311, %v317
        %s322 = sld [smem:[#allocation2 + $0x9]]
        %v323 = vstv %s322
        %v324 = vmul.f32 %v216, %v323
        %v325 = vmul.f32 %v217, %v323
        %v326 = vmul.f32 %v218, %v323
        %v327 = vmul.f32 %v219, %v323
        %v328 = vadd.f32 %v318, %v324
        %v329 = vadd.f32 %v319, %v325
        %v330 = vadd.f32 %v320, %v326
        %v331 = vadd.f32 %v321, %v327
        %s332 = sld [smem:[#allocation2 + $0xa]]
        %v333 = vstv %s332
        %v334 = vmul.f32 %v221, %v333
        %v335 = vmul.f32 %v222, %v333
        %v336 = vmul.f32 %v223, %v333
        %v337 = vmul.f32 %v224, %v333
        %v338 = vadd.f32 %v328, %v334
        %v339 = vadd.f32 %v329, %v335
        %v340 = vadd.f32 %v330, %v336
        %v341 = vadd.f32 %v331, %v337
        %s342 = sld [smem:[#allocation2 + $0xb]]
        %v343 = vstv %s342
        %v344 = vmul.f32 %v226, %v343
        %v345 = vmul.f32 %v227, %v343
        %v346 = vmul.f32 %v228, %v343
        %v347 = vmul.f32 %v229, %v343
        %v348 = vadd.f32 %v338, %v344
        %v349 = vadd.f32 %v339, %v345
        %v350 = vadd.f32 %v340, %v346
        %v351 = vadd.f32 %v341, %v347
        %s352 = sld [smem:[#allocation2 + $0x83]]
        %v353 = vstv %s352
        %v354 = vadd.f32 %v348, %v353
        %v355 = vadd.f32 %v349, %v353
        %v356 = vadd.f32 %v350, %v353
        %v357 = vadd.f32 %v351, %v353
        %v358 = vtanh.pop %v354
        %v359 = vtanh.pop %v355
        %v360 = vtanh.pop %v356
        %v361 = vtanh.pop %v357
        %s362 = sld [smem:[#allocation2 + $0xc]]
        %v363 = vstv %s362
        %v364 = vmul.f32 %v201, %v363
        %v365 = vmul.f32 %v202, %v363
        %v366 = vmul.f32 %v203, %v363
        %v367 = vmul.f32 %v204, %v363
        %s368 = sld [smem:[#allocation2 + $0xd]]
        %v369 = vstv %s368
        %v370 = vmul.f32 %v206, %v369
        %v371 = vmul.f32 %v207, %v369
        %v372 = vmul.f32 %v208, %v369
        %v373 = vmul.f32 %v209, %v369
        %v374 = vadd.f32 %v364, %v370
        %v375 = vadd.f32 %v365, %v371
        %v376 = vadd.f32 %v366, %v372
        %v377 = vadd.f32 %v367, %v373
        %s378 = sld [smem:[#allocation2 + $0xe]]
        %v379 = vstv %s378
        %v380 = vmul.f32 %v211, %v379
        %v381 = vmul.f32 %v212, %v379
        %v382 = vmul.f32 %v213, %v379
        %v383 = vmul.f32 %v214, %v379
        %v384 = vadd.f32 %v374, %v380
        %v385 = vadd.f32 %v375, %v381
        %v386 = vadd.f32 %v376, %v382
        %v387 = vadd.f32 %v377, %v383
        %s388 = sld [smem:[#allocation2 + $0xf]]
        %v389 = vstv %s388
        %v390 = vmul.f32 %v216, %v389
        %v391 = vmul.f32 %v217, %v389
        %v392 = vmul.f32 %v218, %v389
        %v393 = vmul.f32 %v219, %v389
        %v394 = vadd.f32 %v384, %v390
        %v395 = vadd.f32 %v385, %v391
        %v396 = vadd.f32 %v386, %v392
        %v397 = vadd.f32 %v387, %v393
        %s398 = sld [smem:[#allocation2 + $0x10]]
        %v399 = vstv %s398
        %v400 = vmul.f32 %v221, %v399
        %v401 = vmul.f32 %v222, %v399
        %v402 = vmul.f32 %v223, %v399
        %v403 = vmul.f32 %v224, %v399
        %v404 = vadd.f32 %v394, %v400
        %v405 = vadd.f32 %v395, %v401
        %v406 = vadd.f32 %v396, %v402
        %v407 = vadd.f32 %v397, %v403
        %s408 = sld [smem:[#allocation2 + $0x11]]
        %v409 = vstv %s408
        %v410 = vmul.f32 %v226, %v409
        %v411 = vmul.f32 %v227, %v409
        %v412 = vmul.f32 %v228, %v409
        %v413 = vmul.f32 %v229, %v409
        %v414 = vadd.f32 %v404, %v410
        %v415 = vadd.f32 %v405, %v411
        %v416 = vadd.f32 %v406, %v412
        %v417 = vadd.f32 %v407, %v413
        %s418 = sld [smem:[#allocation2 + $0x84]]
        %v419 = vstv %s418
        %v420 = vadd.f32 %v414, %v419
        %v421 = vadd.f32 %v415, %v419
        %v422 = vadd.f32 %v416, %v419
        %v423 = vadd.f32 %v417, %v419
        %v424 = vtanh.pop %v420
        %v425 = vtanh.pop %v421
        %v426 = vtanh.pop %v422
        %v427 = vtanh.pop %v423
        %s428 = sld [smem:[#allocation2 + $0x12]]
        %v429 = vstv %s428
        %v430 = vmul.f32 %v201, %v429
        %v431 = vmul.f32 %v202, %v429
        %v432 = vmul.f32 %v203, %v429
        %v433 = vmul.f32 %v204, %v429
        %s434 = sld [smem:[#allocation2 + $0x13]]
        %v435 = vstv %s434
        %v436 = vmul.f32 %v206, %v435
        %v437 = vmul.f32 %v207, %v435
        %v438 = vmul.f32 %v208, %v435
        %v439 = vmul.f32 %v209, %v435
        %v440 = vadd.f32 %v430, %v436
        %v441 = vadd.f32 %v431, %v437
        %v442 = vadd.f32 %v432, %v438
        %v443 = vadd.f32 %v433, %v439
        %s444 = sld [smem:[#allocation2 + $0x14]]
        %v445 = vstv %s444
        %v446 = vmul.f32 %v211, %v445
        %v447 = vmul.f32 %v212, %v445
        %v448 = vmul.f32 %v213, %v445
        %v449 = vmul.f32 %v214, %v445
        %v450 = vadd.f32 %v440, %v446
        %v451 = vadd.f32 %v441, %v447
        %v452 = vadd.f32 %v442, %v448
        %v453 = vadd.f32 %v443, %v449
        %s454 = sld [smem:[#allocation2 + $0x15]]
        %v455 = vstv %s454
        %v456 = vmul.f32 %v216, %v455
        %v457 = vmul.f32 %v217, %v455
        %v458 = vmul.f32 %v218, %v455
        %v459 = vmul.f32 %v219, %v455
        %v460 = vadd.f32 %v450, %v456
        %v461 = vadd.f32 %v451, %v457
        %v462 = vadd.f32 %v452, %v458
        %v463 = vadd.f32 %v453, %v459
        %s464 = sld [smem:[#allocation2 + $0x16]]
        %v465 = vstv %s464
        %v466 = vmul.f32 %v221, %v465
        %v467 = vmul.f32 %v222, %v465
        %v468 = vmul.f32 %v223, %v465
        %v469 = vmul.f32 %v224, %v465
        %v470 = vadd.f32 %v460, %v466
        %v471 = vadd.f32 %v461, %v467
        %v472 = vadd.f32 %v462, %v468
        %v473 = vadd.f32 %v463, %v469
        %s474 = sld [smem:[#allocation2 + $0x17]]
        %v475 = vstv %s474
        %v476 = vmul.f32 %v226, %v475
        %v477 = vmul.f32 %v227, %v475
        %v478 = vmul.f32 %v228, %v475
        %v479 = vmul.f32 %v229, %v475
        %v480 = vadd.f32 %v470, %v476
        %v481 = vadd.f32 %v471, %v477
        %v482 = vadd.f32 %v472, %v478
        %v483 = vadd.f32 %v473, %v479
        %s484 = sld [smem:[#allocation2 + $0x85]]
        %v485 = vstv %s484
        %v486 = vadd.f32 %v480, %v485
        %v487 = vadd.f32 %v481, %v485
        %v488 = vadd.f32 %v482, %v485
        %v489 = vadd.f32 %v483, %v485
        %v490 = vtanh.pop %v486
        %v491 = vtanh.pop %v487
        %v492 = vtanh.pop %v488
        %v493 = vtanh.pop %v489
        %s494 = sld [smem:[#allocation2 + $0x18]]
        %v495 = vstv %s494
        %v496 = vmul.f32 %v201, %v495
        %v497 = vmul.f32 %v202, %v495
        %v498 = vmul.f32 %v203, %v495
        %v499 = vmul.f32 %v204, %v495
        %s500 = sld [smem:[#allocation2 + $0x19]]
        %v501 = vstv %s500
        %v502 = vmul.f32 %v206, %v501
        %v503 = vmul.f32 %v207, %v501
        %v504 = vmul.f32 %v208, %v501
        %v505 = vmul.f32 %v209, %v501
        %v506 = vadd.f32 %v496, %v502
        %v507 = vadd.f32 %v497, %v503
        %v508 = vadd.f32 %v498, %v504
        %v509 = vadd.f32 %v499, %v505
        %s510 = sld [smem:[#allocation2 + $0x1a]]
        %v511 = vstv %s510
        %v512 = vmul.f32 %v211, %v511
        %v513 = vmul.f32 %v212, %v511
        %v514 = vmul.f32 %v213, %v511
        %v515 = vmul.f32 %v214, %v511
        %v516 = vadd.f32 %v506, %v512
        %v517 = vadd.f32 %v507, %v513
        %v518 = vadd.f32 %v508, %v514
        %v519 = vadd.f32 %v509, %v515
        %s520 = sld [smem:[#allocation2 + $0x1b]]
        %v521 = vstv %s520
        %v522 = vmul.f32 %v216, %v521
        %v523 = vmul.f32 %v217, %v521
        %v524 = vmul.f32 %v218, %v521
        %v525 = vmul.f32 %v219, %v521
        %v526 = vadd.f32 %v516, %v522
        %v527 = vadd.f32 %v517, %v523
        %v528 = vadd.f32 %v518, %v524
        %v529 = vadd.f32 %v519, %v525
        %s530 = sld [smem:[#allocation2 + $0x1c]]
        %v531 = vstv %s530
        %v532 = vmul.f32 %v221, %v531
        %v533 = vmul.f32 %v222, %v531
        %v534 = vmul.f32 %v223, %v531
        %v535 = vmul.f32 %v224, %v531
        %v536 = vadd.f32 %v526, %v532
        %v537 = vadd.f32 %v527, %v533
        %v538 = vadd.f32 %v528, %v534
        %v539 = vadd.f32 %v529, %v535
        %s540 = sld [smem:[#allocation2 + $0x1d]]
        %v541 = vstv %s540
        %v542 = vmul.f32 %v226, %v541
        %v543 = vmul.f32 %v227, %v541
        %v544 = vmul.f32 %v228, %v541
        %v545 = vmul.f32 %v229, %v541
        %v546 = vadd.f32 %v536, %v542
        %v547 = vadd.f32 %v537, %v543
        %v548 = vadd.f32 %v538, %v544
        %v549 = vadd.f32 %v539, %v545
        %s550 = sld [smem:[#allocation2 + $0x86]]
        %v551 = vstv %s550
        %v552 = vadd.f32 %v546, %v551
        %v553 = vadd.f32 %v547, %v551
        %v554 = vadd.f32 %v548, %v551
        %v555 = vadd.f32 %v549, %v551
        %v556 = vtanh.pop %v552
        %v557 = vtanh.pop %v553
        %v558 = vtanh.pop %v554
        %v559 = vtanh.pop %v555
        %s560 = sld [smem:[#allocation2 + $0x1e]]
        %v561 = vstv %s560
        %v562 = vmul.f32 %v292, %v561
        %v563 = vmul.f32 %v293, %v561
        %v564 = vmul.f32 %v294, %v561
        %v565 = vmul.f32 %v295, %v561
        %s566 = sld [smem:[#allocation2 + $0x1f]]
        %v567 = vstv %s566
        %v568 = vmul.f32 %v358, %v567
        %v569 = vmul.f32 %v359, %v567
        %v570 = vmul.f32 %v360, %v567
        %v571 = vmul.f32 %v361, %v567
        %v572 = vadd.f32 %v562, %v568
        %v573 = vadd.f32 %v563, %v569
        %v574 = vadd.f32 %v564, %v570
        %v575 = vadd.f32 %v565, %v571
        %s576 = sld [smem:[#allocation2 + $0x20]]
        %v577 = vstv %s576
        %v578 = vmul.f32 %v424, %v577
        %v579 = vmul.f32 %v425, %v577
        %v580 = vmul.f32 %v426, %v577
        %v581 = vmul.f32 %v427, %v577
        %v582 = vadd.f32 %v572, %v578
        %v583 = vadd.f32 %v573, %v579
        %v584 = vadd.f32 %v574, %v580
        %v585 = vadd.f32 %v575, %v581
        %s586 = sld [smem:[#allocation2 + $0x21]]
        %v587 = vstv %s586
        %v588 = vmul.f32 %v490, %v587
        %v589 = vmul.f32 %v491, %v587
        %v590 = vmul.f32 %v492, %v587
        %v591 = vmul.f32 %v493, %v587
        %v592 = vadd.f32 %v582, %v588
        %v593 = vadd.f32 %v583, %v589
        %v594 = vadd.f32 %v584, %v590
        %v595 = vadd.f32 %v585, %v591
        %s596 = sld [smem:[#allocation2 + $0x22]]
        %v597 = vstv %s596
        %v598 = vmul.f32 %v556, %v597
        %v599 = vmul.f32 %v557, %v597
        %v600 = vmul.f32 %v558, %v597
        %v601 = vmul.f32 %v559, %v597
        %v602 = vadd.f32 %v592, %v598
        %v603 = vadd.f32 %v593, %v599
        %v604 = vadd.f32 %v594, %v600
        %v605 = vadd.f32 %v595, %v601
        %s606 = sld [smem:[#allocation2 + $0x87]]
        %v607 = vstv %s606
        %v608 = vadd.f32 %v602, %v607
        %v609 = vadd.f32 %v603, %v607
        %v610 = vadd.f32 %v604, %v607
        %v611 = vadd.f32 %v605, %v607
        %v612 = vtanh.pop %v608
        %v613 = vtanh.pop %v609
        %v614 = vtanh.pop %v610
        %v615 = vtanh.pop %v611
        %s616 = sld [smem:[#allocation2 + $0x23]]
        %v617 = vstv %s616
        %v618 = vmul.f32 %v292, %v617
        %v619 = vmul.f32 %v293, %v617
        %v620 = vmul.f32 %v294, %v617
        %v621 = vmul.f32 %v295, %v617
        %s622 = sld [smem:[#allocation2 + $0x24]]
        %v623 = vstv %s622
        %v624 = vmul.f32 %v358, %v623
        %v625 = vmul.f32 %v359, %v623
        %v626 = vmul.f32 %v360, %v623
        %v627 = vmul.f32 %v361, %v623
        %v628 = vadd.f32 %v618, %v624
        %v629 = vadd.f32 %v619, %v625
        %v630 = vadd.f32 %v620, %v626
        %v631 = vadd.f32 %v621, %v627
        %s632 = sld [smem:[#allocation2 + $0x25]]
        %v633 = vstv %s632
        %v634 = vmul.f32 %v424, %v633
        %v635 = vmul.f32 %v425, %v633
        %v636 = vmul.f32 %v426, %v633
        %v637 = vmul.f32 %v427, %v633
        %v638 = vadd.f32 %v628, %v634
        %v639 = vadd.f32 %v629, %v635
        %v640 = vadd.f32 %v630, %v636
        %v641 = vadd.f32 %v631, %v637
        %s642 = sld [smem:[#allocation2 + $0x26]]
        %v643 = vstv %s642
        %v644 = vmul.f32 %v490, %v643
        %v645 = vmul.f32 %v491, %v643
        %v646 = vmul.f32 %v492, %v643
        %v647 = vmul.f32 %v493, %v643
        %v648 = vadd.f32 %v638, %v644
        %v649 = vadd.f32 %v639, %v645
        %v650 = vadd.f32 %v640, %v646
        %v651 = vadd.f32 %v641, %v647
        %s652 = sld [smem:[#allocation2 + $0x27]]
        %v653 = vstv %s652
        %v654 = vmul.f32 %v556, %v653
        %v655 = vmul.f32 %v557, %v653
        %v656 = vmul.f32 %v558, %v653
        %v657 = vmul.f32 %v559, %v653
        %v658 = vadd.f32 %v648, %v654
        %v659 = vadd.f32 %v649, %v655
        %v660 = vadd.f32 %v650, %v656
        %v661 = vadd.f32 %v651, %v657
        %s662 = sld [smem:[#allocation2 + $0x88]]
        %v663 = vstv %s662
        %v664 = vadd.f32 %v658, %v663
        %v665 = vadd.f32 %v659, %v663
        %v666 = vadd.f32 %v660, %v663
        %v667 = vadd.f32 %v661, %v663
        %v668 = vtanh.pop %v664
        %v669 = vtanh.pop %v665
        %v670 = vtanh.pop %v666
        %v671 = vtanh.pop %v667
        %s672 = sld [smem:[#allocation2 + $0x28]]
        %v673 = vstv %s672
        %v674 = vmul.f32 %v292, %v673
        %v675 = vmul.f32 %v293, %v673
        %v676 = vmul.f32 %v294, %v673
        %v677 = vmul.f32 %v295, %v673
        %s678 = sld [smem:[#allocation2 + $0x29]]
        %v679 = vstv %s678
        %v680 = vmul.f32 %v358, %v679
        %v681 = vmul.f32 %v359, %v679
        %v682 = vmul.f32 %v360, %v679
        %v683 = vmul.f32 %v361, %v679
        %v684 = vadd.f32 %v674, %v680
        %v685 = vadd.f32 %v675, %v681
        %v686 = vadd.f32 %v676, %v682
        %v687 = vadd.f32 %v677, %v683
        %s688 = sld [smem:[#allocation2 + $0x2a]]
        %v689 = vstv %s688
        %v690 = vmul.f32 %v424, %v689
        %v691 = vmul.f32 %v425, %v689
        %v692 = vmul.f32 %v426, %v689
        %v693 = vmul.f32 %v427, %v689
        %v694 = vadd.f32 %v684, %v690
        %v695 = vadd.f32 %v685, %v691
        %v696 = vadd.f32 %v686, %v692
        %v697 = vadd.f32 %v687, %v693
        %s698 = sld [smem:[#allocation2 + $0x2b]]
        %v699 = vstv %s698
        %v700 = vmul.f32 %v490, %v699
        %v701 = vmul.f32 %v491, %v699
        %v702 = vmul.f32 %v492, %v699
        %v703 = vmul.f32 %v493, %v699
        %v704 = vadd.f32 %v694, %v700
        %v705 = vadd.f32 %v695, %v701
        %v706 = vadd.f32 %v696, %v702
        %v707 = vadd.f32 %v697, %v703
        %s708 = sld [smem:[#allocation2 + $0x2c]]
        %v709 = vstv %s708
        %v710 = vmul.f32 %v556, %v709
        %v711 = vmul.f32 %v557, %v709
        %v712 = vmul.f32 %v558, %v709
        %v713 = vmul.f32 %v559, %v709
        %v714 = vadd.f32 %v704, %v710
        %v715 = vadd.f32 %v705, %v711
        %v716 = vadd.f32 %v706, %v712
        %v717 = vadd.f32 %v707, %v713
        %s718 = sld [smem:[#allocation2 + $0x89]]
        %v719 = vstv %s718
        %v720 = vadd.f32 %v714, %v719
        %v721 = vadd.f32 %v715, %v719
        %v722 = vadd.f32 %v716, %v719
        %v723 = vadd.f32 %v717, %v719
        %v724 = vtanh.pop %v720
        %v725 = vtanh.pop %v721
        %v726 = vtanh.pop %v722
        %v727 = vtanh.pop %v723
        %s728 = sld [smem:[#allocation2 + $0x2d]]
        %v729 = vstv %s728
        %v730 = vmul.f32 %v292, %v729
        %v731 = vmul.f32 %v293, %v729
        %v732 = vmul.f32 %v294, %v729
        %v733 = vmul.f32 %v295, %v729
        %s734 = sld [smem:[#allocation2 + $0x2e]]
        %v735 = vstv %s734
        %v736 = vmul.f32 %v358, %v735
        %v737 = vmul.f32 %v359, %v735
        %v738 = vmul.f32 %v360, %v735
        %v739 = vmul.f32 %v361, %v735
        %v740 = vadd.f32 %v730, %v736
        %v741 = vadd.f32 %v731, %v737
        %v742 = vadd.f32 %v732, %v738
        %v743 = vadd.f32 %v733, %v739
        %s744 = sld [smem:[#allocation2 + $0x2f]]
        %v745 = vstv %s744
        %v746 = vmul.f32 %v424, %v745
        %v747 = vmul.f32 %v425, %v745
        %v748 = vmul.f32 %v426, %v745
        %v749 = vmul.f32 %v427, %v745
        %v750 = vadd.f32 %v740, %v746
        %v751 = vadd.f32 %v741, %v747
        %v752 = vadd.f32 %v742, %v748
        %v753 = vadd.f32 %v743, %v749
        %s754 = sld [smem:[#allocation2 + $0x30]]
        %v755 = vstv %s754
        %v756 = vmul.f32 %v490, %v755
        %v757 = vmul.f32 %v491, %v755
        %v758 = vmul.f32 %v492, %v755
        %v759 = vmul.f32 %v493, %v755
        %v760 = vadd.f32 %v750, %v756
        %v761 = vadd.f32 %v751, %v757
        %v762 = vadd.f32 %v752, %v758
        %v763 = vadd.f32 %v753, %v759
        %s764 = sld [smem:[#allocation2 + $0x31]]
        %v765 = vstv %s764
        %v766 = vmul.f32 %v556, %v765
        %v767 = vmul.f32 %v557, %v765
        %v768 = vmul.f32 %v558, %v765
        %v769 = vmul.f32 %v559, %v765
        %v770 = vadd.f32 %v760, %v766
        %v771 = vadd.f32 %v761, %v767
        %v772 = vadd.f32 %v762, %v768
        %v773 = vadd.f32 %v763, %v769
        %s774 = sld [smem:[#allocation2 + $0x8a]]
        %v775 = vstv %s774
        %v776 = vadd.f32 %v770, %v775
        %v777 = vadd.f32 %v771, %v775
        %v778 = vadd.f32 %v772, %v775
        %v779 = vadd.f32 %v773, %v775
        %v780 = vtanh.pop %v776
        %v781 = vtanh.pop %v777
        %v782 = vtanh.pop %v778
        %v783 = vtanh.pop %v779
        %s784 = sld [smem:[#allocation2 + $0x32]]
        %v785 = vstv %s784
        %v786 = vmul.f32 %v292, %v785
        %v787 = vmul.f32 %v293, %v785
        %v788 = vmul.f32 %v294, %v785
        %v789 = vmul.f32 %v295, %v785
        %s790 = sld [smem:[#allocation2 + $0x33]]
        %v791 = vstv %s790
        %v792 = vmul.f32 %v358, %v791
        %v793 = vmul.f32 %v359, %v791
        %v794 = vmul.f32 %v360, %v791
        %v795 = vmul.f32 %v361, %v791
        %v796 = vadd.f32 %v786, %v792
        %v797 = vadd.f32 %v787, %v793
        %v798 = vadd.f32 %v788, %v794
        %v799 = vadd.f32 %v789, %v795
        %s800 = sld [smem:[#allocation2 + $0x34]]
        %v801 = vstv %s800
        %v802 = vmul.f32 %v424, %v801
        %v803 = vmul.f32 %v425, %v801
        %v804 = vmul.f32 %v426, %v801
        %v805 = vmul.f32 %v427, %v801
        %v806 = vadd.f32 %v796, %v802
        %v807 = vadd.f32 %v797, %v803
        %v808 = vadd.f32 %v798, %v804
        %v809 = vadd.f32 %v799, %v805
        %s810 = sld [smem:[#allocation2 + $0x35]]
        %v811 = vstv %s810
        %v812 = vmul.f32 %v490, %v811
        %v813 = vmul.f32 %v491, %v811
        %v814 = vmul.f32 %v492, %v811
        %v815 = vmul.f32 %v493, %v811
        %v816 = vadd.f32 %v806, %v812
        %v817 = vadd.f32 %v807, %v813
        %v818 = vadd.f32 %v808, %v814
        %v819 = vadd.f32 %v809, %v815
        %s820 = sld [smem:[#allocation2 + $0x36]]
        %v821 = vstv %s820
        %v822 = vmul.f32 %v556, %v821
        %v823 = vmul.f32 %v557, %v821
        %v824 = vmul.f32 %v558, %v821
        %v825 = vmul.f32 %v559, %v821
        %v826 = vadd.f32 %v816, %v822
        %v827 = vadd.f32 %v817, %v823
        %v828 = vadd.f32 %v818, %v824
        %v829 = vadd.f32 %v819, %v825
        %s830 = sld [smem:[#allocation2 + $0x8b]]
        %v831 = vstv %s830
        %v832 = vadd.f32 %v826, %v831
        %v833 = vadd.f32 %v827, %v831
        %v834 = vadd.f32 %v828, %v831
        %v835 = vadd.f32 %v829, %v831
        %v836 = vtanh.pop %v832
        %v837 = vtanh.pop %v833
        %v838 = vtanh.pop %v834
        %v839 = vtanh.pop %v835
        %s840 = sld [smem:[#allocation2 + $0x37]]
        %v841 = vstv %s840
        %v842 = vmul.f32 %v612, %v841
        %v843 = vmul.f32 %v613, %v841
        %v844 = vmul.f32 %v614, %v841
        %v845 = vmul.f32 %v615, %v841
        %s846 = sld [smem:[#allocation2 + $0x38]]
        %v847 = vstv %s846
        %v848 = vmul.f32 %v668, %v847
        %v849 = vmul.f32 %v669, %v847
        %v850 = vmul.f32 %v670, %v847
        %v851 = vmul.f32 %v671, %v847
        %v852 = vadd.f32 %v842, %v848
        %v853 = vadd.f32 %v843, %v849
        %v854 = vadd.f32 %v844, %v850
        %v855 = vadd.f32 %v845, %v851
        %s856 = sld [smem:[#allocation2 + $0x39]]
        %v857 = vstv %s856
        %v858 = vmul.f32 %v724, %v857
        %v859 = vmul.f32 %v725, %v857
        %v860 = vmul.f32 %v726, %v857
        %v861 = vmul.f32 %v727, %v857
        %v862 = vadd.f32 %v852, %v858
        %v863 = vadd.f32 %v853, %v859
        %v864 = vadd.f32 %v854, %v860
        %v865 = vadd.f32 %v855, %v861
        %s866 = sld [smem:[#allocation2 + $0x3a]]
        %v867 = vstv %s866
        %v868 = vmul.f32 %v780, %v867
        %v869 = vmul.f32 %v781, %v867
        %v870 = vmul.f32 %v782, %v867
        %v871 = vmul.f32 %v783, %v867
        %v872 = vadd.f32 %v862, %v868
        %v873 = vadd.f32 %v863, %v869
        %v874 = vadd.f32 %v864, %v870
        %v875 = vadd.f32 %v865, %v871
        %s876 = sld [smem:[#allocation2 + $0x3b]]
        %v877 = vstv %s876
        %v878 = vmul.f32 %v836, %v877
        %v879 = vmul.f32 %v837, %v877
        %v880 = vmul.f32 %v838, %v877
        %v881 = vmul.f32 %v839, %v877
        %v882 = vadd.f32 %v872, %v878
        %v883 = vadd.f32 %v873, %v879
        %v884 = vadd.f32 %v874, %v880
        %v885 = vadd.f32 %v875, %v881
        %s886 = sld [smem:[#allocation2 + $0x8c]]
        %v887 = vstv %s886
        %v888 = vadd.f32 %v882, %v887
        %v889 = vadd.f32 %v883, %v887
        %v890 = vadd.f32 %v884, %v887
        %v891 = vadd.f32 %v885, %v887
        %v892 = vtanh.pop %v888
        %v893 = vtanh.pop %v889
        %v894 = vtanh.pop %v890
        %v895 = vtanh.pop %v891
        %s896 = sld [smem:[#allocation2 + $0x3c]]
        %v897 = vstv %s896
        %v898 = vmul.f32 %v612, %v897
        %v899 = vmul.f32 %v613, %v897
        %v900 = vmul.f32 %v614, %v897
        %v901 = vmul.f32 %v615, %v897
        %s902 = sld [smem:[#allocation2 + $0x3d]]
        %v903 = vstv %s902
        %v904 = vmul.f32 %v668, %v903
        %v905 = vmul.f32 %v669, %v903
        %v906 = vmul.f32 %v670, %v903
        %v907 = vmul.f32 %v671, %v903
        %v908 = vadd.f32 %v898, %v904
        %v909 = vadd.f32 %v899, %v905
        %v910 = vadd.f32 %v900, %v906
        %v911 = vadd.f32 %v901, %v907
        %s912 = sld [smem:[#allocation2 + $0x3e]]
        %v913 = vstv %s912
        %v914 = vmul.f32 %v724, %v913
        %v915 = vmul.f32 %v725, %v913
        %v916 = vmul.f32 %v726, %v913
        %v917 = vmul.f32 %v727, %v913
        %v918 = vadd.f32 %v908, %v914
        %v919 = vadd.f32 %v909, %v915
        %v920 = vadd.f32 %v910, %v916
        %v921 = vadd.f32 %v911, %v917
        %s922 = sld [smem:[#allocation2 + $0x3f]]
        %v923 = vstv %s922
        %v924 = vmul.f32 %v780, %v923
        %v925 = vmul.f32 %v781, %v923
        %v926 = vmul.f32 %v782, %v923
        %v927 = vmul.f32 %v783, %v923
        %v928 = vadd.f32 %v918, %v924
        %v929 = vadd.f32 %v919, %v925
        %v930 = vadd.f32 %v920, %v926
        %v931 = vadd.f32 %v921, %v927
        %s932 = sld [smem:[#allocation2 + $0x40]]
        %v933 = vstv %s932
        %v934 = vmul.f32 %v836, %v933
        %v935 = vmul.f32 %v837, %v933
        %v936 = vmul.f32 %v838, %v933
        %v937 = vmul.f32 %v839, %v933
        %v938 = vadd.f32 %v928, %v934
        %v939 = vadd.f32 %v929, %v935
        %v940 = vadd.f32 %v930, %v936
        %v941 = vadd.f32 %v931, %v937
        %s942 = sld [smem:[#allocation2 + $0x8d]]
        %v943 = vstv %s942
        %v944 = vadd.f32 %v938, %v943
        %v945 = vadd.f32 %v939, %v943
        %v946 = vadd.f32 %v940, %v943
        %v947 = vadd.f32 %v941, %v943
        %v948 = vtanh.pop %v944
        %v949 = vtanh.pop %v945
        %v950 = vtanh.pop %v946
        %v951 = vtanh.pop %v947
        %s952 = sld [smem:[#allocation2 + $0x41]]
        %v953 = vstv %s952
        %v954 = vmul.f32 %v612, %v953
        %v955 = vmul.f32 %v613, %v953
        %v956 = vmul.f32 %v614, %v953
        %v957 = vmul.f32 %v615, %v953
        %s958 = sld [smem:[#allocation2 + $0x42]]
        %v959 = vstv %s958
        %v960 = vmul.f32 %v668, %v959
        %v961 = vmul.f32 %v669, %v959
        %v962 = vmul.f32 %v670, %v959
        %v963 = vmul.f32 %v671, %v959
        %v964 = vadd.f32 %v954, %v960
        %v965 = vadd.f32 %v955, %v961
        %v966 = vadd.f32 %v956, %v962
        %v967 = vadd.f32 %v957, %v963
        %s968 = sld [smem:[#allocation2 + $0x43]]
        %v969 = vstv %s968
        %v970 = vmul.f32 %v724, %v969
        %v971 = vmul.f32 %v725, %v969
        %v972 = vmul.f32 %v726, %v969
        %v973 = vmul.f32 %v727, %v969
        %v974 = vadd.f32 %v964, %v970
        %v975 = vadd.f32 %v965, %v971
        %v976 = vadd.f32 %v966, %v972
        %v977 = vadd.f32 %v967, %v973
        %s978 = sld [smem:[#allocation2 + $0x44]]
        %v979 = vstv %s978
        %v980 = vmul.f32 %v780, %v979
        %v981 = vmul.f32 %v781, %v979
        %v982 = vmul.f32 %v782, %v979
        %v983 = vmul.f32 %v783, %v979
        %v984 = vadd.f32 %v974, %v980
        %v985 = vadd.f32 %v975, %v981
        %v986 = vadd.f32 %v976, %v982
        %v987 = vadd.f32 %v977, %v983
        %s988 = sld [smem:[#allocation2 + $0x45]]
        %v989 = vstv %s988
        %v990 = vmul.f32 %v836, %v989
        %v991 = vmul.f32 %v837, %v989
        %v992 = vmul.f32 %v838, %v989
        %v993 = vmul.f32 %v839, %v989
        %v994 = vadd.f32 %v984, %v990
        %v995 = vadd.f32 %v985, %v991
        %v996 = vadd.f32 %v986, %v992
        %v997 = vadd.f32 %v987, %v993
        %s998 = sld [smem:[#allocation2 + $0x8e]]
        %v999 = vstv %s998
        %v1000 = vadd.f32 %v994, %v999
        %v1001 = vadd.f32 %v995, %v999
        %v1002 = vadd.f32 %v996, %v999
        %v1003 = vadd.f32 %v997, %v999
        %v1004 = vtanh.pop %v1000
        %v1005 = vtanh.pop %v1001
        %v1006 = vtanh.pop %v1002
        %v1007 = vtanh.pop %v1003
        %s1008 = sld [smem:[#allocation2 + $0x46]]
        %v1009 = vstv %s1008
        %v1010 = vmul.f32 %v612, %v1009
        %v1011 = vmul.f32 %v613, %v1009
        %v1012 = vmul.f32 %v614, %v1009
        %v1013 = vmul.f32 %v615, %v1009
        %s1014 = sld [smem:[#allocation2 + $0x47]]
        %v1015 = vstv %s1014
        %v1016 = vmul.f32 %v668, %v1015
        %v1017 = vmul.f32 %v669, %v1015
        %v1018 = vmul.f32 %v670, %v1015
        %v1019 = vmul.f32 %v671, %v1015
        %v1020 = vadd.f32 %v1010, %v1016
        %v1021 = vadd.f32 %v1011, %v1017
        %v1022 = vadd.f32 %v1012, %v1018
        %v1023 = vadd.f32 %v1013, %v1019
        %s1024 = sld [smem:[#allocation2 + $0x48]]
        %v1025 = vstv %s1024
        %v1026 = vmul.f32 %v724, %v1025
        %v1027 = vmul.f32 %v725, %v1025
        %v1028 = vmul.f32 %v726, %v1025
        %v1029 = vmul.f32 %v727, %v1025
        %v1030 = vadd.f32 %v1020, %v1026
        %v1031 = vadd.f32 %v1021, %v1027
        %v1032 = vadd.f32 %v1022, %v1028
        %v1033 = vadd.f32 %v1023, %v1029
        %s1034 = sld [smem:[#allocation2 + $0x49]]
        %v1035 = vstv %s1034
        %v1036 = vmul.f32 %v780, %v1035
        %v1037 = vmul.f32 %v781, %v1035
        %v1038 = vmul.f32 %v782, %v1035
        %v1039 = vmul.f32 %v783, %v1035
        %v1040 = vadd.f32 %v1030, %v1036
        %v1041 = vadd.f32 %v1031, %v1037
        %v1042 = vadd.f32 %v1032, %v1038
        %v1043 = vadd.f32 %v1033, %v1039
        %s1044 = sld [smem:[#allocation2 + $0x4a]]
        %v1045 = vstv %s1044
        %v1046 = vmul.f32 %v836, %v1045
        %v1047 = vmul.f32 %v837, %v1045
        %v1048 = vmul.f32 %v838, %v1045
        %v1049 = vmul.f32 %v839, %v1045
        %v1050 = vadd.f32 %v1040, %v1046
        %v1051 = vadd.f32 %v1041, %v1047
        %v1052 = vadd.f32 %v1042, %v1048
        %v1053 = vadd.f32 %v1043, %v1049
        %s1054 = sld [smem:[#allocation2 + $0x8f]]
        %v1055 = vstv %s1054
        %v1056 = vadd.f32 %v1050, %v1055
        %v1057 = vadd.f32 %v1051, %v1055
        %v1058 = vadd.f32 %v1052, %v1055
        %v1059 = vadd.f32 %v1053, %v1055
        %v1060 = vtanh.pop %v1056
        %v1061 = vtanh.pop %v1057
        %v1062 = vtanh.pop %v1058
        %v1063 = vtanh.pop %v1059
        %s1064 = sld [smem:[#allocation2 + $0x4b]]
        %v1065 = vstv %s1064
        %v1066 = vmul.f32 %v612, %v1065
        %v1067 = vmul.f32 %v613, %v1065
        %v1068 = vmul.f32 %v614, %v1065
        %v1069 = vmul.f32 %v615, %v1065
        %s1070 = sld [smem:[#allocation2 + $0x4c]]
        %v1071 = vstv %s1070
        %v1072 = vmul.f32 %v668, %v1071
        %v1073 = vmul.f32 %v669, %v1071
        %v1074 = vmul.f32 %v670, %v1071
        %v1075 = vmul.f32 %v671, %v1071
        %v1076 = vadd.f32 %v1066, %v1072
        %v1077 = vadd.f32 %v1067, %v1073
        %v1078 = vadd.f32 %v1068, %v1074
        %v1079 = vadd.f32 %v1069, %v1075
        %s1080 = sld [smem:[#allocation2 + $0x4d]]
        %v1081 = vstv %s1080
        %v1082 = vmul.f32 %v724, %v1081
        %v1083 = vmul.f32 %v725, %v1081
        %v1084 = vmul.f32 %v726, %v1081
        %v1085 = vmul.f32 %v727, %v1081
        %v1086 = vadd.f32 %v1076, %v1082
        %v1087 = vadd.f32 %v1077, %v1083
        %v1088 = vadd.f32 %v1078, %v1084
        %v1089 = vadd.f32 %v1079, %v1085
        %s1090 = sld [smem:[#allocation2 + $0x4e]]
        %v1091 = vstv %s1090
        %v1092 = vmul.f32 %v780, %v1091
        %v1093 = vmul.f32 %v781, %v1091
        %v1094 = vmul.f32 %v782, %v1091
        %v1095 = vmul.f32 %v783, %v1091
        %v1096 = vadd.f32 %v1086, %v1092
        %v1097 = vadd.f32 %v1087, %v1093
        %v1098 = vadd.f32 %v1088, %v1094
        %v1099 = vadd.f32 %v1089, %v1095
        %s1100 = sld [smem:[#allocation2 + $0x4f]]
        %v1101 = vstv %s1100
        %v1102 = vmul.f32 %v836, %v1101
        %v1103 = vmul.f32 %v837, %v1101
        %v1104 = vmul.f32 %v838, %v1101
        %v1105 = vmul.f32 %v839, %v1101
        %v1106 = vadd.f32 %v1096, %v1102
        %v1107 = vadd.f32 %v1097, %v1103
        %v1108 = vadd.f32 %v1098, %v1104
        %v1109 = vadd.f32 %v1099, %v1105
        %s1110 = sld [smem:[#allocation2 + $0x90]]
        %v1111 = vstv %s1110
        %v1112 = vadd.f32 %v1106, %v1111
        %v1113 = vadd.f32 %v1107, %v1111
        %v1114 = vadd.f32 %v1108, %v1111
        %v1115 = vadd.f32 %v1109, %v1111
        %v1116 = vtanh.pop %v1112
        %v1117 = vtanh.pop %v1113
        %v1118 = vtanh.pop %v1114
        %v1119 = vtanh.pop %v1115
        %s1120 = sld [smem:[#allocation2 + $0x50]]
        %v1121 = vstv %s1120
        %v1122 = vmul.f32 %v892, %v1121
        %v1123 = vmul.f32 %v893, %v1121
        %v1124 = vmul.f32 %v894, %v1121
        %v1125 = vmul.f32 %v895, %v1121
        %s1126 = sld [smem:[#allocation2 + $0x51]]
        %v1127 = vstv %s1126
        %v1128 = vmul.f32 %v948, %v1127
        %v1129 = vmul.f32 %v949, %v1127
        %v1130 = vmul.f32 %v950, %v1127
        %v1131 = vmul.f32 %v951, %v1127
        %v1132 = vadd.f32 %v1122, %v1128
        %v1133 = vadd.f32 %v1123, %v1129
        %v1134 = vadd.f32 %v1124, %v1130
        %v1135 = vadd.f32 %v1125, %v1131
        %s1136 = sld [smem:[#allocation2 + $0x52]]
        %v1137 = vstv %s1136
        %v1138 = vmul.f32 %v1004, %v1137
        %v1139 = vmul.f32 %v1005, %v1137
        %v1140 = vmul.f32 %v1006, %v1137
        %v1141 = vmul.f32 %v1007, %v1137
        %v1142 = vadd.f32 %v1132, %v1138
        %v1143 = vadd.f32 %v1133, %v1139
        %v1144 = vadd.f32 %v1134, %v1140
        %v1145 = vadd.f32 %v1135, %v1141
        %s1146 = sld [smem:[#allocation2 + $0x53]]
        %v1147 = vstv %s1146
        %v1148 = vmul.f32 %v1060, %v1147
        %v1149 = vmul.f32 %v1061, %v1147
        %v1150 = vmul.f32 %v1062, %v1147
        %v1151 = vmul.f32 %v1063, %v1147
        %v1152 = vadd.f32 %v1142, %v1148
        %v1153 = vadd.f32 %v1143, %v1149
        %v1154 = vadd.f32 %v1144, %v1150
        %v1155 = vadd.f32 %v1145, %v1151
        %s1156 = sld [smem:[#allocation2 + $0x54]]
        %v1157 = vstv %s1156
        %v1158 = vmul.f32 %v1116, %v1157
        %v1159 = vmul.f32 %v1117, %v1157
        %v1160 = vmul.f32 %v1118, %v1157
        %v1161 = vmul.f32 %v1119, %v1157
        %v1162 = vadd.f32 %v1152, %v1158
        %v1163 = vadd.f32 %v1153, %v1159
        %v1164 = vadd.f32 %v1154, %v1160
        %v1165 = vadd.f32 %v1155, %v1161
        %s1166 = sld [smem:[#allocation2 + $0x91]]
        %v1167 = vstv %s1166
        %v1168 = vadd.f32 %v1162, %v1167
        %v1169 = vadd.f32 %v1163, %v1167
        %v1170 = vadd.f32 %v1164, %v1167
        %v1171 = vadd.f32 %v1165, %v1167
        %v1172 = vtanh.pop %v1168
        %v1173 = vtanh.pop %v1169
        %v1174 = vtanh.pop %v1170
        %v1175 = vtanh.pop %v1171
        %s1176 = sld [smem:[#allocation2 + $0x55]]
        %v1177 = vstv %s1176
        %v1178 = vmul.f32 %v892, %v1177
        %v1179 = vmul.f32 %v893, %v1177
        %v1180 = vmul.f32 %v894, %v1177
        %v1181 = vmul.f32 %v895, %v1177
        %s1182 = sld [smem:[#allocation2 + $0x56]]
        %v1183 = vstv %s1182
        %v1184 = vmul.f32 %v948, %v1183
        %v1185 = vmul.f32 %v949, %v1183
        %v1186 = vmul.f32 %v950, %v1183
        %v1187 = vmul.f32 %v951, %v1183
        %v1188 = vadd.f32 %v1178, %v1184
        %v1189 = vadd.f32 %v1179, %v1185
        %v1190 = vadd.f32 %v1180, %v1186
        %v1191 = vadd.f32 %v1181, %v1187
        %s1192 = sld [smem:[#allocation2 + $0x57]]
        %v1193 = vstv %s1192
        %v1194 = vmul.f32 %v1004, %v1193
        %v1195 = vmul.f32 %v1005, %v1193
        %v1196 = vmul.f32 %v1006, %v1193
        %v1197 = vmul.f32 %v1007, %v1193
        %v1198 = vadd.f32 %v1188, %v1194
        %v1199 = vadd.f32 %v1189, %v1195
        %v1200 = vadd.f32 %v1190, %v1196
        %v1201 = vadd.f32 %v1191, %v1197
        %s1202 = sld [smem:[#allocation2 + $0x58]]
        %v1203 = vstv %s1202
        %v1204 = vmul.f32 %v1060, %v1203
        %v1205 = vmul.f32 %v1061, %v1203
        %v1206 = vmul.f32 %v1062, %v1203
        %v1207 = vmul.f32 %v1063, %v1203
        %v1208 = vadd.f32 %v1198, %v1204
        %v1209 = vadd.f32 %v1199, %v1205
        %v1210 = vadd.f32 %v1200, %v1206
        %v1211 = vadd.f32 %v1201, %v1207
        %s1212 = sld [smem:[#allocation2 + $0x59]]
        %v1213 = vstv %s1212
        %v1214 = vmul.f32 %v1116, %v1213
        %v1215 = vmul.f32 %v1117, %v1213
        %v1216 = vmul.f32 %v1118, %v1213
        %v1217 = vmul.f32 %v1119, %v1213
        %v1218 = vadd.f32 %v1208, %v1214
        %v1219 = vadd.f32 %v1209, %v1215
        %v1220 = vadd.f32 %v1210, %v1216
        %v1221 = vadd.f32 %v1211, %v1217
        %s1222 = sld [smem:[#allocation2 + $0x92]]
        %v1223 = vstv %s1222
        %v1224 = vadd.f32 %v1218, %v1223
        %v1225 = vadd.f32 %v1219, %v1223
        %v1226 = vadd.f32 %v1220, %v1223
        %v1227 = vadd.f32 %v1221, %v1223
        %v1228 = vtanh.pop %v1224
        %v1229 = vtanh.pop %v1225
        %v1230 = vtanh.pop %v1226
        %v1231 = vtanh.pop %v1227
        %s1232 = sld [smem:[#allocation2 + $0x5a]]
        %v1233 = vstv %s1232
        %v1234 = vmul.f32 %v892, %v1233
        %v1235 = vmul.f32 %v893, %v1233
        %v1236 = vmul.f32 %v894, %v1233
        %v1237 = vmul.f32 %v895, %v1233
        %s1238 = sld [smem:[#allocation2 + $0x5b]]
        %v1239 = vstv %s1238
        %v1240 = vmul.f32 %v948, %v1239
        %v1241 = vmul.f32 %v949, %v1239
        %v1242 = vmul.f32 %v950, %v1239
        %v1243 = vmul.f32 %v951, %v1239
        %v1244 = vadd.f32 %v1234, %v1240
        %v1245 = vadd.f32 %v1235, %v1241
        %v1246 = vadd.f32 %v1236, %v1242
        %v1247 = vadd.f32 %v1237, %v1243
        %s1248 = sld [smem:[#allocation2 + $0x5c]]
        %v1249 = vstv %s1248
        %v1250 = vmul.f32 %v1004, %v1249
        %v1251 = vmul.f32 %v1005, %v1249
        %v1252 = vmul.f32 %v1006, %v1249
        %v1253 = vmul.f32 %v1007, %v1249
        %v1254 = vadd.f32 %v1244, %v1250
        %v1255 = vadd.f32 %v1245, %v1251
        %v1256 = vadd.f32 %v1246, %v1252
        %v1257 = vadd.f32 %v1247, %v1253
        %s1258 = sld [smem:[#allocation2 + $0x5d]]
        %v1259 = vstv %s1258
        %v1260 = vmul.f32 %v1060, %v1259
        %v1261 = vmul.f32 %v1061, %v1259
        %v1262 = vmul.f32 %v1062, %v1259
        %v1263 = vmul.f32 %v1063, %v1259
        %v1264 = vadd.f32 %v1254, %v1260
        %v1265 = vadd.f32 %v1255, %v1261
        %v1266 = vadd.f32 %v1256, %v1262
        %v1267 = vadd.f32 %v1257, %v1263
        %s1268 = sld [smem:[#allocation2 + $0x5e]]
        %v1269 = vstv %s1268
        %v1270 = vmul.f32 %v1116, %v1269
        %v1271 = vmul.f32 %v1117, %v1269
        %v1272 = vmul.f32 %v1118, %v1269
        %v1273 = vmul.f32 %v1119, %v1269
        %v1274 = vadd.f32 %v1264, %v1270
        %v1275 = vadd.f32 %v1265, %v1271
        %v1276 = vadd.f32 %v1266, %v1272
        %v1277 = vadd.f32 %v1267, %v1273
        %s1278 = sld [smem:[#allocation2 + $0x93]]
        %v1279 = vstv %s1278
        %v1280 = vadd.f32 %v1274, %v1279
        %v1281 = vadd.f32 %v1275, %v1279
        %v1282 = vadd.f32 %v1276, %v1279
        %v1283 = vadd.f32 %v1277, %v1279
        %v1284 = vtanh.pop %v1280
        %v1285 = vtanh.pop %v1281
        %v1286 = vtanh.pop %v1282
        %v1287 = vtanh.pop %v1283
        %s1288 = sld [smem:[#allocation2 + $0x5f]]
        %v1289 = vstv %s1288
        %v1290 = vmul.f32 %v892, %v1289
        %v1291 = vmul.f32 %v893, %v1289
        %v1292 = vmul.f32 %v894, %v1289
        %v1293 = vmul.f32 %v895, %v1289
        %s1294 = sld [smem:[#allocation2 + $0x60]]
        %v1295 = vstv %s1294
        %v1296 = vmul.f32 %v948, %v1295
        %v1297 = vmul.f32 %v949, %v1295
        %v1298 = vmul.f32 %v950, %v1295
        %v1299 = vmul.f32 %v951, %v1295
        %v1300 = vadd.f32 %v1290, %v1296
        %v1301 = vadd.f32 %v1291, %v1297
        %v1302 = vadd.f32 %v1292, %v1298
        %v1303 = vadd.f32 %v1293, %v1299
        %s1304 = sld [smem:[#allocation2 + $0x61]]
        %v1305 = vstv %s1304
        %v1306 = vmul.f32 %v1004, %v1305
        %v1307 = vmul.f32 %v1005, %v1305
        %v1308 = vmul.f32 %v1006, %v1305
        %v1309 = vmul.f32 %v1007, %v1305
        %v1310 = vadd.f32 %v1300, %v1306
        %v1311 = vadd.f32 %v1301, %v1307
        %v1312 = vadd.f32 %v1302, %v1308
        %v1313 = vadd.f32 %v1303, %v1309
        %s1314 = sld [smem:[#allocation2 + $0x62]]
        %v1315 = vstv %s1314
        %v1316 = vmul.f32 %v1060, %v1315
        %v1317 = vmul.f32 %v1061, %v1315
        %v1318 = vmul.f32 %v1062, %v1315
        %v1319 = vmul.f32 %v1063, %v1315
        %v1320 = vadd.f32 %v1310, %v1316
        %v1321 = vadd.f32 %v1311, %v1317
        %v1322 = vadd.f32 %v1312, %v1318
        %v1323 = vadd.f32 %v1313, %v1319
        %s1324 = sld [smem:[#allocation2 + $0x63]]
        %v1325 = vstv %s1324
        %v1326 = vmul.f32 %v1116, %v1325
        %v1327 = vmul.f32 %v1117, %v1325
        %v1328 = vmul.f32 %v1118, %v1325
        %v1329 = vmul.f32 %v1119, %v1325
        %v1330 = vadd.f32 %v1320, %v1326
        %v1331 = vadd.f32 %v1321, %v1327
        %v1332 = vadd.f32 %v1322, %v1328
        %v1333 = vadd.f32 %v1323, %v1329
        %s1334 = sld [smem:[#allocation2 + $0x94]]
        %v1335 = vstv %s1334
        %v1336 = vadd.f32 %v1330, %v1335
        %v1337 = vadd.f32 %v1331, %v1335
        %v1338 = vadd.f32 %v1332, %v1335
        %v1339 = vadd.f32 %v1333, %v1335
        %v1340 = vtanh.pop %v1336
        %v1341 = vtanh.pop %v1337
        %v1342 = vtanh.pop %v1338
        %v1343 = vtanh.pop %v1339
        %s1344 = sld [smem:[#allocation2 + $0x64]]
        %v1345 = vstv %s1344
        %v1346 = vmul.f32 %v892, %v1345
        %v1347 = vmul.f32 %v893, %v1345
        %v1348 = vmul.f32 %v894, %v1345
        %v1349 = vmul.f32 %v895, %v1345
        %s1350 = sld [smem:[#allocation2 + $0x65]]
        %v1351 = vstv %s1350
        %v1352 = vmul.f32 %v948, %v1351
        %v1353 = vmul.f32 %v949, %v1351
        %v1354 = vmul.f32 %v950, %v1351
        %v1355 = vmul.f32 %v951, %v1351
        %v1356 = vadd.f32 %v1346, %v1352
        %v1357 = vadd.f32 %v1347, %v1353
        %v1358 = vadd.f32 %v1348, %v1354
        %v1359 = vadd.f32 %v1349, %v1355
        %s1360 = sld [smem:[#allocation2 + $0x66]]
        %v1361 = vstv %s1360
        %v1362 = vmul.f32 %v1004, %v1361
        %v1363 = vmul.f32 %v1005, %v1361
        %v1364 = vmul.f32 %v1006, %v1361
        %v1365 = vmul.f32 %v1007, %v1361
        %v1366 = vadd.f32 %v1356, %v1362
        %v1367 = vadd.f32 %v1357, %v1363
        %v1368 = vadd.f32 %v1358, %v1364
        %v1369 = vadd.f32 %v1359, %v1365
        %s1370 = sld [smem:[#allocation2 + $0x67]]
        %v1371 = vstv %s1370
        %v1372 = vmul.f32 %v1060, %v1371
        %v1373 = vmul.f32 %v1061, %v1371
        %v1374 = vmul.f32 %v1062, %v1371
        %v1375 = vmul.f32 %v1063, %v1371
        %v1376 = vadd.f32 %v1366, %v1372
        %v1377 = vadd.f32 %v1367, %v1373
        %v1378 = vadd.f32 %v1368, %v1374
        %v1379 = vadd.f32 %v1369, %v1375
        %s1380 = sld [smem:[#allocation2 + $0x68]]
        %v1381 = vstv %s1380
        %v1382 = vmul.f32 %v1116, %v1381
        %v1383 = vmul.f32 %v1117, %v1381
        %v1384 = vmul.f32 %v1118, %v1381
        %v1385 = vmul.f32 %v1119, %v1381
        %v1386 = vadd.f32 %v1376, %v1382
        %v1387 = vadd.f32 %v1377, %v1383
        %v1388 = vadd.f32 %v1378, %v1384
        %v1389 = vadd.f32 %v1379, %v1385
        %s1390 = sld [smem:[#allocation2 + $0x95]]
        %v1391 = vstv %s1390
        %v1392 = vadd.f32 %v1386, %v1391
        %v1393 = vadd.f32 %v1387, %v1391
        %v1394 = vadd.f32 %v1388, %v1391
        %v1395 = vadd.f32 %v1389, %v1391
        %v1396 = vtanh.pop %v1392
        %v1397 = vtanh.pop %v1393
        %v1398 = vtanh.pop %v1394
        %v1399 = vtanh.pop %v1395
        %s1400 = sld [smem:[#allocation2 + $0x69]]
        %v1401 = vstv %s1400
        %v1402 = vmul.f32 %v1172, %v1401
        %v1403 = vmul.f32 %v1173, %v1401
        %v1404 = vmul.f32 %v1174, %v1401
        %v1405 = vmul.f32 %v1175, %v1401
        %s1406 = sld [smem:[#allocation2 + $0x6a]]
        %v1407 = vstv %s1406
        %v1408 = vmul.f32 %v1228, %v1407
        %v1409 = vmul.f32 %v1229, %v1407
        %v1410 = vmul.f32 %v1230, %v1407
        %v1411 = vmul.f32 %v1231, %v1407
        %v1412 = vadd.f32 %v1402, %v1408
        %v1413 = vadd.f32 %v1403, %v1409
        %v1414 = vadd.f32 %v1404, %v1410
        %v1415 = vadd.f32 %v1405, %v1411
        %s1416 = sld [smem:[#allocation2 + $0x6b]]
        %v1417 = vstv %s1416
        %v1418 = vmul.f32 %v1284, %v1417
        %v1419 = vmul.f32 %v1285, %v1417
        %v1420 = vmul.f32 %v1286, %v1417
        %v1421 = vmul.f32 %v1287, %v1417
        %v1422 = vadd.f32 %v1412, %v1418
        %v1423 = vadd.f32 %v1413, %v1419
        %v1424 = vadd.f32 %v1414, %v1420
        %v1425 = vadd.f32 %v1415, %v1421
        %s1426 = sld [smem:[#allocation2 + $0x6c]]
        %v1427 = vstv %s1426
        %v1428 = vmul.f32 %v1340, %v1427
        %v1429 = vmul.f32 %v1341, %v1427
        %v1430 = vmul.f32 %v1342, %v1427
        %v1431 = vmul.f32 %v1343, %v1427
        %v1432 = vadd.f32 %v1422, %v1428
        %v1433 = vadd.f32 %v1423, %v1429
        %v1434 = vadd.f32 %v1424, %v1430
        %v1435 = vadd.f32 %v1425, %v1431
        %s1436 = sld [smem:[#allocation2 + $0x6d]]
        %v1437 = vstv %s1436
        %v1438 = vmul.f32 %v1396, %v1437
        %v1439 = vmul.f32 %v1397, %v1437
        %v1440 = vmul.f32 %v1398, %v1437
        %v1441 = vmul.f32 %v1399, %v1437
        %v1442 = vadd.f32 %v1432, %v1438
        %v1443 = vadd.f32 %v1433, %v1439
        %v1444 = vadd.f32 %v1434, %v1440
        %v1445 = vadd.f32 %v1435, %v1441
        %s1446 = sld [smem:[#allocation2 + $0x96]]
        %v1447 = vstv %s1446
        %v1448 = vadd.f32 %v1442, %v1447
        %v1449 = vadd.f32 %v1443, %v1447
        %v1450 = vadd.f32 %v1444, %v1447
        %v1451 = vadd.f32 %v1445, %v1447
        %s1452 = sld [smem:[#allocation2 + $0x6e]]
        %v1453 = vstv %s1452
        %v1454 = vmul.f32 %v1172, %v1453
        %v1455 = vmul.f32 %v1173, %v1453
        %v1456 = vmul.f32 %v1174, %v1453
        %v1457 = vmul.f32 %v1175, %v1453
        %s1458 = sld [smem:[#allocation2 + $0x6f]]
        %v1459 = vstv %s1458
        %v1460 = vmul.f32 %v1228, %v1459
        %v1461 = vmul.f32 %v1229, %v1459
        %v1462 = vmul.f32 %v1230, %v1459
        %v1463 = vmul.f32 %v1231, %v1459
        %v1464 = vadd.f32 %v1454, %v1460
        %v1465 = vadd.f32 %v1455, %v1461
        %v1466 = vadd.f32 %v1456, %v1462
        %v1467 = vadd.f32 %v1457, %v1463
        %s1468 = sld [smem:[#allocation2 + $0x70]]
        %v1469 = vstv %s1468
        %v1470 = vmul.f32 %v1284, %v1469
        %v1471 = vmul.f32 %v1285, %v1469
        %v1472 = vmul.f32 %v1286, %v1469
        %v1473 = vmul.f32 %v1287, %v1469
        %v1474 = vadd.f32 %v1464, %v1470
        %v1475 = vadd.f32 %v1465, %v1471
        %v1476 = vadd.f32 %v1466, %v1472
        %v1477 = vadd.f32 %v1467, %v1473
        %s1478 = sld [smem:[#allocation2 + $0x71]]
        %v1479 = vstv %s1478
        %v1480 = vmul.f32 %v1340, %v1479
        %v1481 = vmul.f32 %v1341, %v1479
        %v1482 = vmul.f32 %v1342, %v1479
        %v1483 = vmul.f32 %v1343, %v1479
        %v1484 = vadd.f32 %v1474, %v1480
        %v1485 = vadd.f32 %v1475, %v1481
        %v1486 = vadd.f32 %v1476, %v1482
        %v1487 = vadd.f32 %v1477, %v1483
        %s1488 = sld [smem:[#allocation2 + $0x72]]
        %v1489 = vstv %s1488
        %v1490 = vmul.f32 %v1396, %v1489
        %v1491 = vmul.f32 %v1397, %v1489
        %v1492 = vmul.f32 %v1398, %v1489
        %v1493 = vmul.f32 %v1399, %v1489
        %v1494 = vadd.f32 %v1484, %v1490
        %v1495 = vadd.f32 %v1485, %v1491
        %v1496 = vadd.f32 %v1486, %v1492
        %v1497 = vadd.f32 %v1487, %v1493
        %s1498 = sld [smem:[#allocation2 + $0x97]]
        %v1499 = vstv %s1498
        %v1500 = vadd.f32 %v1494, %v1499
        %v1501 = vadd.f32 %v1495, %v1499
        %v1502 = vadd.f32 %v1496, %v1499
        %v1503 = vadd.f32 %v1497, %v1499
        %s1504 = sld [smem:[#allocation2 + $0x73]]
        %v1505 = vstv %s1504
        %v1506 = vmul.f32 %v1172, %v1505
        %v1507 = vmul.f32 %v1173, %v1505
        %v1508 = vmul.f32 %v1174, %v1505
        %v1509 = vmul.f32 %v1175, %v1505
        %s1510 = sld [smem:[#allocation2 + $0x74]]
        %v1511 = vstv %s1510
        %v1512 = vmul.f32 %v1228, %v1511
        %v1513 = vmul.f32 %v1229, %v1511
        %v1514 = vmul.f32 %v1230, %v1511
        %v1515 = vmul.f32 %v1231, %v1511
        %v1516 = vadd.f32 %v1506, %v1512
        %v1517 = vadd.f32 %v1507, %v1513
        %v1518 = vadd.f32 %v1508, %v1514
        %v1519 = vadd.f32 %v1509, %v1515
        %s1520 = sld [smem:[#allocation2 + $0x75]]
        %v1521 = vstv %s1520
        %v1522 = vmul.f32 %v1284, %v1521
        %v1523 = vmul.f32 %v1285, %v1521
        %v1524 = vmul.f32 %v1286, %v1521
        %v1525 = vmul.f32 %v1287, %v1521
        %v1526 = vadd.f32 %v1516, %v1522
        %v1527 = vadd.f32 %v1517, %v1523
        %v1528 = vadd.f32 %v1518, %v1524
        %v1529 = vadd.f32 %v1519, %v1525
        %s1530 = sld [smem:[#allocation2 + $0x76]]
        %v1531 = vstv %s1530
        %v1532 = vmul.f32 %v1340, %v1531
        %v1533 = vmul.f32 %v1341, %v1531
        %v1534 = vmul.f32 %v1342, %v1531
        %v1535 = vmul.f32 %v1343, %v1531
        %v1536 = vadd.f32 %v1526, %v1532
        %v1537 = vadd.f32 %v1527, %v1533
        %v1538 = vadd.f32 %v1528, %v1534
        %v1539 = vadd.f32 %v1529, %v1535
        %s1540 = sld [smem:[#allocation2 + $0x77]]
        %v1541 = vstv %s1540
        %v1542 = vmul.f32 %v1396, %v1541
        %v1543 = vmul.f32 %v1397, %v1541
        %v1544 = vmul.f32 %v1398, %v1541
        %v1545 = vmul.f32 %v1399, %v1541
        %v1546 = vadd.f32 %v1536, %v1542
        %v1547 = vadd.f32 %v1537, %v1543
        %v1548 = vadd.f32 %v1538, %v1544
        %v1549 = vadd.f32 %v1539, %v1545
        %s1550 = sld [smem:[#allocation2 + $0x98]]
        %v1551 = vstv %s1550
        %v1552 = vadd.f32 %v1546, %v1551
        %v1553 = vadd.f32 %v1547, %v1551
        %v1554 = vadd.f32 %v1548, %v1551
        %v1555 = vadd.f32 %v1549, %v1551
        %s1556 = sld [smem:[#allocation2 + $0x78]]
        %v1557 = vstv %s1556
        %v1558 = vmul.f32 %v1172, %v1557
        %v1559 = vmul.f32 %v1173, %v1557
        %v1560 = vmul.f32 %v1174, %v1557
        %v1561 = vmul.f32 %v1175, %v1557
        %s1562 = sld [smem:[#allocation2 + $0x79]]
        %v1563 = vstv %s1562
        %v1564 = vmul.f32 %v1228, %v1563
        %v1565 = vmul.f32 %v1229, %v1563
        %v1566 = vmul.f32 %v1230, %v1563
        %v1567 = vmul.f32 %v1231, %v1563
        %v1568 = vadd.f32 %v1558, %v1564
        %v1569 = vadd.f32 %v1559, %v1565
        %v1570 = vadd.f32 %v1560, %v1566
        %v1571 = vadd.f32 %v1561, %v1567
        %s1572 = sld [smem:[#allocation2 + $0x7a]]
        %v1573 = vstv %s1572
        %v1574 = vmul.f32 %v1284, %v1573
        %v1575 = vmul.f32 %v1285, %v1573
        %v1576 = vmul.f32 %v1286, %v1573
        %v1577 = vmul.f32 %v1287, %v1573
        %v1578 = vadd.f32 %v1568, %v1574
        %v1579 = vadd.f32 %v1569, %v1575
        %v1580 = vadd.f32 %v1570, %v1576
        %v1581 = vadd.f32 %v1571, %v1577
        %s1582 = sld [smem:[#allocation2 + $0x7b]]
        %v1583 = vstv %s1582
        %v1584 = vmul.f32 %v1340, %v1583
        %v1585 = vmul.f32 %v1341, %v1583
        %v1586 = vmul.f32 %v1342, %v1583
        %v1587 = vmul.f32 %v1343, %v1583
        %v1588 = vadd.f32 %v1578, %v1584
        %v1589 = vadd.f32 %v1579, %v1585
        %v1590 = vadd.f32 %v1580, %v1586
        %v1591 = vadd.f32 %v1581, %v1587
        %s1592 = sld [smem:[#allocation2 + $0x7c]]
        %v1593 = vstv %s1592
        %v1594 = vmul.f32 %v1396, %v1593
        %v1595 = vmul.f32 %v1397, %v1593
        %v1596 = vmul.f32 %v1398, %v1593
        %v1597 = vmul.f32 %v1399, %v1593
        %v1598 = vadd.f32 %v1588, %v1594
        %v1599 = vadd.f32 %v1589, %v1595
        %v1600 = vadd.f32 %v1590, %v1596
        %v1601 = vadd.f32 %v1591, %v1597
        %s1602 = sld [smem:[#allocation2 + $0x99]]
        %v1603 = vstv %s1602
        %v1604 = vadd.f32 %v1598, %v1603
        %v1605 = vadd.f32 %v1599, %v1603
        %v1606 = vadd.f32 %v1600, %v1603
        %v1607 = vadd.f32 %v1601, %v1603
        %s1608 = sld [smem:[#allocation2 + $0x7d]]
        %v1609 = vstv %s1608
        %v1610 = vmul.f32 %v1172, %v1609
        %v1611 = vmul.f32 %v1173, %v1609
        %v1612 = vmul.f32 %v1174, %v1609
        %v1613 = vmul.f32 %v1175, %v1609
        %s1614 = sld [smem:[#allocation2 + $0x7e]]
        %v1615 = vstv %s1614
        %v1616 = vmul.f32 %v1228, %v1615
        %v1617 = vmul.f32 %v1229, %v1615
        %v1618 = vmul.f32 %v1230, %v1615
        %v1619 = vmul.f32 %v1231, %v1615
        %v1620 = vadd.f32 %v1610, %v1616
        %v1621 = vadd.f32 %v1611, %v1617
        %v1622 = vadd.f32 %v1612, %v1618
        %v1623 = vadd.f32 %v1613, %v1619
        %s1624 = sld [smem:[#allocation2 + $0x7f]]
        %v1625 = vstv %s1624
        %v1626 = vmul.f32 %v1284, %v1625
        %v1627 = vmul.f32 %v1285, %v1625
        %v1628 = vmul.f32 %v1286, %v1625
        %v1629 = vmul.f32 %v1287, %v1625
        %v1630 = vadd.f32 %v1620, %v1626
        %v1631 = vadd.f32 %v1621, %v1627
        %v1632 = vadd.f32 %v1622, %v1628
        %v1633 = vadd.f32 %v1623, %v1629
        %s1634 = sld [smem:[#allocation2 + $0x80]]
        %v1635 = vstv %s1634
        %v1636 = vmul.f32 %v1340, %v1635
        %v1637 = vmul.f32 %v1341, %v1635
        %v1638 = vmul.f32 %v1342, %v1635
        %v1639 = vmul.f32 %v1343, %v1635
        %v1640 = vadd.f32 %v1630, %v1636
        %v1641 = vadd.f32 %v1631, %v1637
        %v1642 = vadd.f32 %v1632, %v1638
        %v1643 = vadd.f32 %v1633, %v1639
        %s1644 = sld [smem:[#allocation2 + $0x81]]
        %v1645 = vstv %s1644
        %v1646 = vmul.f32 %v1396, %v1645
        %v1647 = vmul.f32 %v1397, %v1645
        %v1648 = vmul.f32 %v1398, %v1645
        %v1649 = vmul.f32 %v1399, %v1645
        %v1650 = vadd.f32 %v1640, %v1646
        %v1651 = vadd.f32 %v1641, %v1647
        %v1652 = vadd.f32 %v1642, %v1648
        %v1653 = vadd.f32 %v1643, %v1649
        %s1654 = sld [smem:[#allocation2 + $0x9a]]
        %v1655 = vstv %s1654
        %v1656 = vadd.f32 %v1650, %v1655
        %v1657 = vadd.f32 %v1651, %v1655
        %v1658 = vadd.f32 %v1652, %v1655
        %v1659 = vadd.f32 %v1653, %v1655
        %1660 = vst [vmem:[%s198] sm:$0xff] %v1448
        %1661 = vst [vmem:[%s198 + $0x8] sm:$0xff] %v1449
        %1662 = vst [vmem:[%s198 + $0x10] sm:$0xff] %v1450
        %1663 = vst [vmem:[%s198 + $0x18] sm:$0xff] %v1451
        %s1664 = scalar_lea.vmem %s198, 32 [#allocation7]
        %1665 = vst [vmem:[%s1664] sm:$0xff] %v1500
        %1666 = vst [vmem:[%s1664 + $0x8] sm:$0xff] %v1501
        %1667 = vst [vmem:[%s1664 + $0x10] sm:$0xff] %v1502
        %1668 = vst [vmem:[%s1664 + $0x18] sm:$0xff] %v1503
        %s1669 = scalar_lea.vmem %s198, 64 [#allocation7]
        %1670 = vst [vmem:[%s1669] sm:$0xff] %v1552
        %1671 = vst [vmem:[%s1669 + $0x8] sm:$0xff] %v1553
        %1672 = vst [vmem:[%s1669 + $0x10] sm:$0xff] %v1554
        %1673 = vst [vmem:[%s1669 + $0x18] sm:$0xff] %v1555
        %s1674 = scalar_lea.vmem %s198, 96 [#allocation7]
        %1675 = vst [vmem:[%s1674] sm:$0xff] %v1604
        %1676 = vst [vmem:[%s1674 + $0x8] sm:$0xff] %v1605
        %1677 = vst [vmem:[%s1674 + $0x10] sm:$0xff] %v1606
        %1678 = vst [vmem:[%s1674 + $0x18] sm:$0xff] %v1607
        %s1679 = scalar_lea.vmem %s198, 128 [#allocation7]
        %1680 = vst [vmem:[%s1679] sm:$0xff] %v1656
        %1681 = vst [vmem:[%s1679 + $0x8] sm:$0xff] %v1657
        %1682 = vst [vmem:[%s1679 + $0x10] sm:$0xff] %v1658
        %1683 = vst [vmem:[%s1679 + $0x18] sm:$0xff] %v1659
        %s1684 = sand.u32 %s75, 1
        %s1685 = scalar_lea.sflag [#allocation4], %s1684
        %s1686 = sand.u32 %s75, 1
        %s1687 = smul.addr %s1686, 160
        %s1688 = scalar_lea.vmem [#allocation7], %s1687
        // Predicated region
        $region37: #{tpu_custom_call.1} parent=27 // pred_check
          %p1689 = pneg %p85
        $region38: #{tpu_custom_call.1} parent=27 // pred_check_branch
          %1691 = sbr.rel (%p1689) target = $region40
        $region39: #{tpu_custom_call.1} parent=27 // pred_region
          #allocation11 [shape = 'u32[6]{0}', space=smem, size = 0x18, scoped, tag = 'DMA stride descriptor']
          %s1692 = smul.u32 4, %s20
          %s1694 = ssub.s32 2560, 2560
          %1695 = vsyncadd %s1685, %s1694
          %s1696 = smul.addr %s1692, 128
          %s1697 = scalar_lea.hbm %s2, %s1696
          %s1699 = sshll.u32 1, 14
          %s1700 = sxor.u32 4294967295, %s1699
          %s1703 = sshll.u32 7, 18
          %s1704 = sxor.u32 4294967295, %s1703
          %s1705 = sand.u32 0, %s1704
          %s1707 = sor.u32 %s1705, 0
          %s1709 = sshll.u32 3, 24
          %s1710 = sxor.u32 4294967295, %s1709
          %s1711 = sand.u32 %s1707, %s1710
          %s1713 = sor.u32 %s1711, 0
          %s1714 = sshll.u32 %s1688, 4
          %s1715 = int_to_ptr.vmem [resolvable:$true] %s1714
          %1721 = sst [smem:[#allocation11]] 512
          %s1722 = scalar_lea.smem [#allocation11], 1
          %1723 = sst [smem:[%s1722]] 1024
          %s1724 = scalar_lea.smem [#allocation11], 2
          %1725 = sst [smem:[%s1724]] 4
          %s1726 = scalar_lea.smem [#allocation11], 3
          %1727 = sst [smem:[%s1726]] 128
          %s1728 = scalar_lea.smem [#allocation11], 4
          %1729 = sst [smem:[%s1728]] 128
          %s1730 = scalar_lea.smem [#allocation11], 5
          %1731 = sst [smem:[%s1730]] 8
          %1733 = dma.general %s1715, 2560, %s1697, %s1685, [#allocation10], [#allocation11], %s1713, 0
        $region40: #{tpu_custom_call.1} parent=27 // pred_fallthru
          _
      $region28: #{tpu_custom_call.1} parent=5 // pred_fallthru
        _
      %p1734 = scmp.le.s32.totalorder 2, %s15
      // Predicated region
      $region41: #{tpu_custom_call.1} parent=5 // pred_check
        %p1735 = pneg %p1734
      $region42: #{tpu_custom_call.1} parent=5 // pred_check_branch
        %1737 = sbr.rel (%p1735) target = $region44
      $region43: #{tpu_custom_call.1} parent=5 // pred_region
        %s1738 = ssub.s32 %s15, 2
        // Predicated region
        $region45: #{tpu_custom_call.1} parent=43 // pred_check
          %p1739 = pneg %p91
        $region46: #{tpu_custom_call.1} parent=43 // pred_check_branch
          %1741 = sbr.rel (%p1739) target = $region48
        $region47: #{tpu_custom_call.1} parent=43 // pred_region
          %s1742 = sand.u32 %s76, 1
          %s1743 = scalar_lea.sflag [#allocation4], %s1742
          %s1744 = sand.u32 %s76, 1
          %s1745 = smul.addr %s1744, 160
          %s1746 = scalar_lea.vmem [#allocation7], %s1745
          %1747 = dma.done %s1743, 2560
        $region48: #{tpu_custom_call.1} parent=43 // pred_fallthru
          _
      $region44: #{tpu_custom_call.1} parent=5 // pred_fallthru
        _
    $region6: #{tpu_custom_call.1} parent=1 // loop_footer
      %s19 = sadd.s32 1, %s15
    $region7: #{tpu_custom_call.1} parent=1 // loop_footer_branch
      %14 = sbr.rel target = $region3
    $region8: #{tpu_custom_call.1} parent=1 // loop_exit
      _
    %1748 = vsyncpa [#allocation3], 1
    %s1749 = scalar_lea.sflag [#allocation3], 1
    %1750 = vsyncpa %s1749, 1
    %1751 = vsyncpa [#allocation4], 1
    %s1752 = scalar_lea.sflag [#allocation4], 1
    %1753 = vsyncpa %s1752, 1
    %1754 = vsyncpa [#allocation5], 1
    %s1755 = scalar_lea.sflag [#allocation5], 1
    %1756 = vsyncpa %s1755, 1

</llo_original>
